<compile_context>
chip_gen: v7x
topology: tpu7x:2x2x1
jax: 0.10.0
libtpu: 0.0.40
codegen_flags: <defaults>
</compile_context>

<pallas_src>
import functools

import jax
import jax.numpy as jnp
from jax.experimental import pallas as pl
from jax.experimental.pallas import tpu as pltpu


def conv2d_sym_kernel(x_ref, w_ref, b_ref, o_ref, *, ksize, wp, ho, wo):
    """Single invocation over the whole (small) batch.

    x_ref: (N, Cin, Hp*Wp + K - 1)  edge-padded images, flattened lane-dense
    w_ref: (Cout, K*K*Cin)          conv weights, columns ordered (kh, kw, cin)
    b_ref: (Cout, 1)                bias
    o_ref: (N, Cout, Ho*Wo)         output, spatial flattened on the lane axis
    """
    n_batch, cin, _ = x_ref.shape
    cout = w_ref.shape[0]
    k = ksize
    lv = ho * wp                      # shifted-view length (incl. junk columns)

    w = w_ref[...]                    # tiny; resident for the whole body
    b = b_ref[...].astype(jnp.float32)

    for n in range(n_batch):          # N == 2: static unroll, one matmul each
        x = x_ref[n]                  # (Cin, Hp*Wp + K - 1), lane-dense
        # K*K shifted views: static lane-offset slices only (no sublane->lane
        # folds on the input).  Row order (kh, kw, cin) matches w_ref columns.
        views = [x[:, kh * wp + kw: kh * wp + kw + lv]
                 for kh in range(k) for kw in range(k)]
        patches = jnp.concatenate(views, axis=0)           # (K*K*Cin, Ho*Wp)

        acc = jnp.dot(w, patches, preferred_element_type=jnp.float32)
        acc = acc + b                                       # (Cout, Ho*Wp)

        # Compact Wp -> Wo once, on the tiny result: drop the K-1 junk columns
        # each output row picked up from the flat-slice im2col.
        acc = acc.reshape(cout, ho, wp)[:, :, :wo].reshape(cout, ho * wo)

        # Dropout in eval mode == identity.
        o_ref[n] = acc.astype(o_ref.dtype)                  # lane-dense store


def conv2d_sym_forward(x_nchw, weight_oihw, bias, *, offset):
    """Replicate-pad by `offset` on all sides, then conv(k, stride=1, pad=0).

    x_nchw:      (N, Cin, H, W)
    weight_oihw: (Cout, Cin, K, K)   (PyTorch conv weight layout)
    bias:        (Cout,)
    returns:     (N, Cout, H + 2*offset - K + 1, W + 2*offset - K + 1)
    """
    N, Cin, H, W = x_nchw.shape
    Cout, _, K, _ = weight_oihw.shape
    Hp, Wp = H + 2 * offset, W + 2 * offset
    Ho, Wo = Hp - K + 1, Wp - K + 1

    # Replicate ("edge") pad in the wrapper: <10 KiB extra HBM traffic per
    # image, vs. lane-axis concat relayouts on the XLU if done in-kernel.
    x_pad = jnp.pad(
        x_nchw, ((0, 0), (0, 0), (offset, offset), (offset, offset)),
        mode="edge")
    # Free metadata reshape on contiguous NCHW: lane-dense (Cin, Hp*Wp).
    x_flat = x_pad.reshape(N, Cin, Hp * Wp)
    # K-1 trailing junk columns so every shifted im2col view has length Ho*Wp.
    x_flat = jnp.pad(x_flat, ((0, 0), (0, 0), (0, K - 1)))

    # Tiny parameter re-packs; column order (kh, kw, cin) matches the kernel.
    w_mat = jnp.transpose(weight_oihw, (0, 2, 3, 1)).reshape(Cout, K * K * Cin)
    b_col = bias.reshape(Cout, 1)

    kernel = functools.partial(conv2d_sym_kernel, ksize=K, wp=Wp, ho=Ho, wo=Wo)

    out_flat = pl.pallas_call(
        kernel,
        out_shape=jax.ShapeDtypeStruct((N, Cout, Ho * Wo), x_nchw.dtype),
        # Everything is a few KiB: whole arrays resident in VMEM, single
        # kernel invocation (no grid, no per-step pipeline overhead).
        in_specs=[
            pl.BlockSpec(memory_space=pltpu.MemorySpace.VMEM),
            pl.BlockSpec(memory_space=pltpu.MemorySpace.VMEM),
            pl.BlockSpec(memory_space=pltpu.MemorySpace.VMEM),
        ],
        out_specs=pl.BlockSpec(memory_space=pltpu.MemorySpace.VMEM),
    )(x_flat, w_mat, b_col)

    # (N, Cout, Ho*Wo) -> (N, Cout, Ho, Wo): free minor-dim split.
    return out_flat.reshape(N, Cout, Ho, Wo)


def reference_conv(x_nchw, weight_oihw, bias, offset):
    """Pure-JAX reference (lax conv) for the correctness check."""
    x_pad = jnp.pad(
        x_nchw, ((0, 0), (0, 0), (offset, offset), (offset, offset)),
        mode="edge")
    out = jax.lax.conv_general_dilated(
        x_pad, weight_oihw, window_strides=(1, 1), padding="VALID",
        dimension_numbers=("NCHW", "OIHW", "NCHW"))
    return out + bias.reshape(1, -1, 1, 1)


if __name__ == "__main__":
    # Module config: Conv2d_Sym(ch_in=4, ch_out=8, offset=1, kernel_size=3, stride=1)
    ch_in, ch_out, offset, ksize = 4, 8, 1, 3
    N, H, W = 2, 16, 16

    key = jax.random.PRNGKey(0)
    kx, kw_key, kb_key = jax.random.split(key, 3)

    x = jax.random.normal(kx, (N, ch_in, H, W), dtype=jnp.float32)

    # Deterministic parameter init mimicking PyTorch's default conv init
    # (uniform in [-1/sqrt(fan_in), 1/sqrt(fan_in)]).
    fan_in = ch_in * ksize * ksize
    bound = 1.0 / (fan_in ** 0.5)
    weight = jax.random.uniform(kw_key, (ch_out, ch_in, ksize, ksize),
                                minval=-bound, maxval=bound, dtype=jnp.float32)
    bias = jax.random.uniform(kb_key, (ch_out,), minval=-bound, maxval=bound,
                              dtype=jnp.float32)

    fwd = jax.jit(functools.partial(conv2d_sym_forward, offset=offset))
    out = jax.block_until_ready(fwd(x, weight, bias))

    ref = jax.block_until_ready(reference_conv(x, weight, bias, offset))
    Ho = H + 2 * offset - ksize + 1
    Wo = W + 2 * offset - ksize + 1
    assert out.shape == (N, ch_out, Ho, Wo), out.shape
    assert jnp.allclose(out, ref, atol=1e-4, rtol=1e-4), (
        "mismatch vs reference, max abs err = "
        f"{float(jnp.max(jnp.abs(out - ref)))}")

    print("KERNEL_OK")
</pallas_src>

<mosaic_0001>
module attributes {stable_mosaic.version = 11 : i64} {
  func.func @conv2d_sym_kernel(%arg0: memref<2x4x326xf32, #tpu.memory_space<vmem>>, %arg1: memref<8x36xf32, #tpu.memory_space<vmem>>, %arg2: memref<8x1xf32, #tpu.memory_space<vmem>>, %arg3: memref<2x8x256xf32, #tpu.memory_space<vmem>>) attributes {dimension_semantics = [], scalar_prefetch = 0 : i64, scratch_operands = 0 : i64, tpu.core_type = #tpu.core_type<tc>} {
    %c0 = arith.constant 0 : index
    %c0_0 = arith.constant 0 : index
    %0 = vector.load %arg1[%c0, %c0_0] : memref<8x36xf32, #tpu.memory_space<vmem>>, vector<8x36xf32>
    %c0_1 = arith.constant 0 : index
    %c0_2 = arith.constant 0 : index
    %1 = vector.load %arg2[%c0_1, %c0_2] : memref<8x1xf32, #tpu.memory_space<vmem>>, vector<8x1xf32>
    %c0_3 = arith.constant 0 : index
    %c0_4 = arith.constant 0 : index
    %c0_5 = arith.constant 0 : index
    %2 = vector.load %arg0[%c0_3, %c0_4, %c0_5] : memref<2x4x326xf32, #tpu.memory_space<vmem>>, vector<1x4x326xf32>
    %3 = vector.shape_cast %2 : vector<1x4x326xf32> to vector<4x326xf32>
    %4 = vector.extract_strided_slice %3 {offsets = [0, 0], sizes = [4, 288], strides = [1, 1]} : vector<4x326xf32> to vector<4x288xf32>
    %5 = vector.extract_strided_slice %3 {offsets = [0, 1], sizes = [4, 288], strides = [1, 1]} : vector<4x326xf32> to vector<4x288xf32>
    %6 = vector.extract_strided_slice %3 {offsets = [0, 2], sizes = [4, 288], strides = [1, 1]} : vector<4x326xf32> to vector<4x288xf32>
    %7 = vector.extract_strided_slice %3 {offsets = [0, 18], sizes = [4, 288], strides = [1, 1]} : vector<4x326xf32> to vector<4x288xf32>
    %8 = vector.extract_strided_slice %3 {offsets = [0, 19], sizes = [4, 288], strides = [1, 1]} : vector<4x326xf32> to vector<4x288xf32>
    %9 = vector.extract_strided_slice %3 {offsets = [0, 20], sizes = [4, 288], strides = [1, 1]} : vector<4x326xf32> to vector<4x288xf32>
    %10 = vector.extract_strided_slice %3 {offsets = [0, 36], sizes = [4, 288], strides = [1, 1]} : vector<4x326xf32> to vector<4x288xf32>
    %11 = vector.extract_strided_slice %3 {offsets = [0, 37], sizes = [4, 288], strides = [1, 1]} : vector<4x326xf32> to vector<4x288xf32>
    %12 = vector.extract_strided_slice %3 {offsets = [0, 38], sizes = [4, 288], strides = [1, 1]} : vector<4x326xf32> to vector<4x288xf32>
    %13 = tpu.concatenate %4, %5, %6, %7, %8, %9, %10, %11, %12 in 0 : vector<4x288xf32>, vector<4x288xf32>, vector<4x288xf32>, vector<4x288xf32>, vector<4x288xf32>, vector<4x288xf32>, vector<4x288xf32>, vector<4x288xf32>, vector<4x288xf32> -> vector<36x288xf32>
    %cst = arith.constant dense<0.000000e+00> : vector<8x288xf32>
    %14 = tpu.matmul %0, %13, %cst {dimension_numbers = #tpu.dot_dimension_numbers<[1], [0], [0], [1], [0, 0, 1, 1], [], []>} : vector<8x36xf32>, vector<36x288xf32>, vector<8x288xf32> -> vector<8x288xf32>
    %15 = vector.broadcast %1 : vector<8x1xf32> to vector<8x288xf32>
    %16 = arith.addf %14, %15 : vector<8x288xf32>
    %17 = vector.shape_cast %16 : vector<8x288xf32> to vector<8x16x18xf32>
    %18 = vector.extract_strided_slice %17 {offsets = [0, 0, 0], sizes = [8, 16, 16], strides = [1, 1, 1]} : vector<8x16x18xf32> to vector<8x16x16xf32>
    %19 = vector.shape_cast %18 : vector<8x16x16xf32> to vector<8x256xf32>
    %c0_6 = arith.constant 0 : index
    %c0_7 = arith.constant 0 : index
    %c0_8 = arith.constant 0 : index
    %20 = vector.load %arg3[%c0_6, %c0_7, %c0_8] : memref<2x8x256xf32, #tpu.memory_space<vmem>>, vector<1x8x256xf32>
    %21 = vector.shape_cast %20 : vector<1x8x256xf32> to vector<8x256xf32>
    %22 = vector.shape_cast %19 : vector<8x256xf32> to vector<1x8x256xf32>
    tpu.vector_store %arg3[%c0_6, %c0_7, %c0_8], %22 {strides = array<i32>} : memref<2x8x256xf32, #tpu.memory_space<vmem>>, vector<1x8x256xf32>,
    %c1 = arith.constant 1 : index
    %c0_9 = arith.constant 0 : index
    %c0_10 = arith.constant 0 : index
    %23 = vector.load %arg0[%c1, %c0_9, %c0_10] : memref<2x4x326xf32, #tpu.memory_space<vmem>>, vector<1x4x326xf32>
    %24 = vector.shape_cast %23 : vector<1x4x326xf32> to vector<4x326xf32>
    %25 = vector.extract_strided_slice %24 {offsets = [0, 0], sizes = [4, 288], strides = [1, 1]} : vector<4x326xf32> to vector<4x288xf32>
    %26 = vector.extract_strided_slice %24 {offsets = [0, 1], sizes = [4, 288], strides = [1, 1]} : vector<4x326xf32> to vector<4x288xf32>
    %27 = vector.extract_strided_slice %24 {offsets = [0, 2], sizes = [4, 288], strides = [1, 1]} : vector<4x326xf32> to vector<4x288xf32>
    %28 = vector.extract_strided_slice %24 {offsets = [0, 18], sizes = [4, 288], strides = [1, 1]} : vector<4x326xf32> to vector<4x288xf32>
    %29 = vector.extract_strided_slice %24 {offsets = [0, 19], sizes = [4, 288], strides = [1, 1]} : vector<4x326xf32> to vector<4x288xf32>
    %30 = vector.extract_strided_slice %24 {offsets = [0, 20], sizes = [4, 288], strides = [1, 1]} : vector<4x326xf32> to vector<4x288xf32>
    %31 = vector.extract_strided_slice %24 {offsets = [0, 36], sizes = [4, 288], strides = [1, 1]} : vector<4x326xf32> to vector<4x288xf32>
    %32 = vector.extract_strided_slice %24 {offsets = [0, 37], sizes = [4, 288], strides = [1, 1]} : vector<4x326xf32> to vector<4x288xf32>
    %33 = vector.extract_strided_slice %24 {offsets = [0, 38], sizes = [4, 288], strides = [1, 1]} : vector<4x326xf32> to vector<4x288xf32>
    %34 = tpu.concatenate %25, %26, %27, %28, %29, %30, %31, %32, %33 in 0 : vector<4x288xf32>, vector<4x288xf32>, vector<4x288xf32>, vector<4x288xf32>, vector<4x288xf32>, vector<4x288xf32>, vector<4x288xf32>, vector<4x288xf32>, vector<4x288xf32> -> vector<36x288xf32>
    %cst_11 = arith.constant dense<0.000000e+00> : vector<8x288xf32>
    %35 = tpu.matmul %0, %34, %cst_11 {dimension_numbers = #tpu.dot_dimension_numbers<[1], [0], [0], [1], [0, 0, 1, 1], [], []>} : vector<8x36xf32>, vector<36x288xf32>, vector<8x288xf32> -> vector<8x288xf32>
    %36 = vector.broadcast %1 : vector<8x1xf32> to vector<8x288xf32>
    %37 = arith.addf %35, %36 : vector<8x288xf32>
    %38 = vector.shape_cast %37 : vector<8x288xf32> to vector<8x16x18xf32>
    %39 = vector.extract_strided_slice %38 {offsets = [0, 0, 0], sizes = [8, 16, 16], strides = [1, 1, 1]} : vector<8x16x18xf32> to vector<8x16x16xf32>
    %40 = vector.shape_cast %39 : vector<8x16x16xf32> to vector<8x256xf32>
    %c1_12 = arith.constant 1 : index
    %c0_13 = arith.constant 0 : index
    %c0_14 = arith.constant 0 : index
    %41 = vector.load %arg3[%c1_12, %c0_13, %c0_14] : memref<2x8x256xf32, #tpu.memory_space<vmem>>, vector<1x8x256xf32>
    %42 = vector.shape_cast %41 : vector<1x8x256xf32> to vector<8x256xf32>
    %43 = vector.shape_cast %40 : vector<8x256xf32> to vector<1x8x256xf32>
    tpu.vector_store %arg3[%c1_12, %c0_13, %c0_14], %43 {strides = array<i32>} : memref<2x8x256xf32, #tpu.memory_space<vmem>>, vector<1x8x256xf32>,
    return
  }
}

</mosaic_0001>

<llo_original>
// kernel: conv2d_sym_forward.1
$region0: #{conv2d_sym_forward.1}
  #allocation0 [shape = 'u32[]', space=smem, size = 0x4, offset = 0x4, fixed_abs, tag = 'smem constant byte address 0x4 - core index']
  #allocation1 [shape = 'u32[144,128]{1,0:T(1,128)}', space=vmem, size = 0x12000, scoped, tag = 'internal scratch']
  %s0 = inlined_call_operand.vmem [shape: f32[2,4,326], index: 0, kind: input, shape index: {}]
  %s1 = inlined_call_operand.vmem [shape: f32[8,36], index: 1, kind: input, shape index: {}]
  %s2 = inlined_call_operand.vmem [shape: f32[8,1], index: 2, kind: input, shape index: {}]
  %s3 = inlined_call_operand.vmem [shape: f32[2,8,256], index: 3, kind: output, shape index: {}]
  %s4 = sld [smem:[#allocation0]]
  $region22: #{conv2d_sym_forward.1} parent=0
    _
  %s6 = ssub.s32 1, %s4
  %s7 = scalar_select 0, %s6, %s4
  // Predicated region
  $region2: #{conv2d_sym_forward.1} parent=0 // pred_check
    _
  $region3: #{conv2d_sym_forward.1} parent=0 // pred_check_branch
    %9 = sbr.rel (0) target = $region5
  $region4: #{conv2d_sym_forward.1} parent=0 // pred_region
    _
  $region5: #{conv2d_sym_forward.1} parent=0 // pred_fallthru
    _
  // Predicated region
  $region6: #{conv2d_sym_forward.1} parent=0 // pred_check
    _
  $region7: #{conv2d_sym_forward.1} parent=0 // pred_check_branch
    %11 = sbr.rel (0) target = $region9
  $region8: #{conv2d_sym_forward.1} parent=0 // pred_region
    _
  $region9: #{conv2d_sym_forward.1} parent=0 // pred_fallthru
    _
  // Predicated region
  $region10: #{conv2d_sym_forward.1} parent=0 // pred_check
    _
  $region11: #{conv2d_sym_forward.1} parent=0 // pred_check_branch
    %13 = sbr.rel (0) target = $region13
  $region12: #{conv2d_sym_forward.1} parent=0 // pred_region
    _
  $region13: #{conv2d_sym_forward.1} parent=0 // pred_fallthru
    _
  %v14 = vld [vmem:[%s1] sm:$0xff]
  %v15 = vld [vmem:[%s2] sm:$0xff]
  %v16 = vld [vmem:[%s0] sm:$0xff]
  %v17 = vld [vmem:[%s0 + $0x8] sm:$0xf]
  %v20 = vcombine.high %v16, %v16
  %v22 = vcombine.low %v16, %v16
  %v23 = vcombine.low %v17, %v17
  %24 = vrot.lane.b32.xlu0 %v22, 127
  %v25 = vpop.permute.xlu0 %24
  %26 = vrot.lane.b32.xlu0 %v16, 127
  %v27 = vpop.permute.xlu0 %26
  %28 = vrot.lane.b32.xlu0 %v23, 127
  %v29 = vpop.permute.xlu0 %28
  %vm30 = vcmask 1039360
  %v31 = vsel %vm30, %v25, %v27
  %v32 = vsel %vm30, %v27, %v29
  %36 = vrot.lane.b32.xlu0 %v16, 126
  %v37 = vpop.permute.xlu0 %36
  %38 = vrot.lane.b32.xlu0 %v20, 126
  %v39 = vpop.permute.xlu0 %38
  %40 = vrot.lane.b32.xlu0 %v17, 126
  %v41 = vpop.permute.xlu0 %40
  %vm42 = vcmask 1031168
  %v43 = vsel %vm42, %v37, %v39
  %v44 = vsel %vm42, %v39, %v41
  %48 = vrot.lane.b32.xlu0 %v22, 110
  %v49 = vpop.permute.xlu0 %48
  %50 = vrot.lane.b32.xlu0 %v16, 110
  %v51 = vpop.permute.xlu0 %50
  %52 = vrot.lane.b32.xlu0 %v23, 110
  %v53 = vpop.permute.xlu0 %52
  %vm54 = vcmask 900096
  %v55 = vsel %vm54, %v49, %v51
  %v56 = vsel %vm54, %v51, %v53
  %60 = vrot.lane.b32.xlu0 %v16, 109
  %v61 = vpop.permute.xlu0 %60
  %62 = vrot.lane.b32.xlu0 %v20, 109
  %v63 = vpop.permute.xlu0 %62
  %64 = vrot.lane.b32.xlu0 %v17, 109
  %v65 = vpop.permute.xlu0 %64
  %vm66 = vcmask 891904
  %v67 = vsel %vm66, %v61, %v63
  %v68 = vsel %vm66, %v63, %v65
  %72 = vrot.lane.b32.xlu0 %v22, 108
  %v73 = vpop.permute.xlu0 %72
  %74 = vrot.lane.b32.xlu0 %v16, 108
  %v75 = vpop.permute.xlu0 %74
  %76 = vrot.lane.b32.xlu0 %v23, 108
  %v77 = vpop.permute.xlu0 %76
  %vm78 = vcmask 883712
  %v79 = vsel %vm78, %v73, %v75
  %v80 = vsel %vm78, %v75, %v77
  %84 = vrot.lane.b32.xlu0 %v16, 92
  %v85 = vpop.permute.xlu0 %84
  %86 = vrot.lane.b32.xlu0 %v20, 92
  %v87 = vpop.permute.xlu0 %86
  %88 = vrot.lane.b32.xlu0 %v17, 92
  %v89 = vpop.permute.xlu0 %88
  %vm90 = vcmask 752640
  %v91 = vsel %vm90, %v85, %v87
  %v92 = vsel %vm90, %v87, %v89
  %96 = vrot.lane.b32.xlu0 %v22, 91
  %v97 = vpop.permute.xlu0 %96
  %98 = vrot.lane.b32.xlu0 %v16, 91
  %v99 = vpop.permute.xlu0 %98
  %100 = vrot.lane.b32.xlu0 %v23, 91
  %v101 = vpop.permute.xlu0 %100
  %vm102 = vcmask 744448
  %v103 = vsel %vm102, %v97, %v99
  %v104 = vsel %vm102, %v99, %v101
  %108 = vrot.lane.b32.xlu0 %v16, 90
  %v109 = vpop.permute.xlu0 %108
  %110 = vrot.lane.b32.xlu0 %v20, 90
  %v111 = vpop.permute.xlu0 %110
  %112 = vrot.lane.b32.xlu0 %v17, 90
  %v113 = vpop.permute.xlu0 %112
  %vm114 = vcmask 736256
  %v115 = vsel %vm114, %v109, %v111
  %v116 = vsel %vm114, %v111, %v113
  %vm117 = vcmask 1043456
  %v118 = vsel %vm117, %v16, %v31
  %v119 = vsel %vm117, %v20, %v32
  %v120 = vsel %vm117, %v17, %v29
  %v121 = vsel %vm117, %v43, %v55
  %v122 = vsel %vm117, %v44, %v56
  %v123 = vsel %vm117, %v41, %v53
  %v124 = vsel %vm117, %v67, %v79
  %v125 = vsel %vm117, %v68, %v80
  %v126 = vsel %vm117, %v65, %v77
  %v127 = vsel %vm117, %v91, %v103
  %v128 = vsel %vm117, %v92, %v104
  %v129 = vsel %vm117, %v89, %v101
  %131 = vset.pattern.permute.xlu0 0
  %132 = vperm.xlu0 %131, %v15
  %v133 = vpop.permute.xlu0 %132
  %vm135 = vcmask 293888
  %v137 = vsel %vm135, %v14, 0
  %v139 = vsel %vm117, %v115, 0
  %v141 = vsel %vm117, %v116, 0
  %v143 = vsel %vm117, %v113, 0
  %145 = vmatprep.subr.mxu0 %v119
  %146 = vmatpush1.msra.mxu0 %v118
  %147 = vmatprep.subr.mxu0 %v122
  %148 = vmatpush1.msra.mxu0 %v121
  %149 = vmatprep.subr.mxu0 %v125
  %150 = vmatpush1.msra.mxu0 %v124
  %151 = vmatprep.subr.mxu0 %v128
  %152 = vmatpush1.msra.mxu0 %v127
  %153 = vmatprep.subr.mxu0 %v141
  %154 = vmatpush1.msra.mxu0 %v139
  %155 = vmatprep.subr.mxu0 0.0
  %156 = vmatpush1.msra.mxu0 0.0
  %157 = vmatprep.subr.mxu0 0.0
  %158 = vmatpush1.msra.mxu0 0.0
  %159 = vmatprep.subr.mxu0 0.0
  %160 = vmatpush1.msra.mxu0 0.0
  %161 = vmatprep.subr.mxu0 0.0
  %162 = vmatpush1.msra.mxu0 0.0
  %163 = vmatprep.subr.mxu0 0.0
  %164 = vmatpush1.msra.mxu0 0.0
  %165 = vmatprep.subr.mxu0 0.0
  %166 = vmatpush1.msra.mxu0 0.0
  %167 = vmatprep.subr.mxu0 0.0
  %168 = vmatpush1.msra.mxu0 0.0
  %169 = vmatprep.subr.mxu0 0.0
  %170 = vmatpush1.msra.mxu0 0.0
  %171 = vmatprep.subr.mxu0 0.0
  %172 = vmatpush1.msra.mxu0 0.0
  %173 = vmatprep.subr.mxu0 0.0
  %174 = vmatpush1.msra.mxu0 0.0
  %175 = vmatprep.subr.mxu0 0.0
  %176 = vmatpush1.msra.mxu0 0.0
  %177 = vmatprep.subr.mxu0 0.0
  %178 = vmatpush1.msra.mxu0 0.0
  %179 = vmatprep.subr.mxu0 0.0
  %180 = vmatpush1.msra.mxu0 0.0
  %181 = vmatprep.subr.mxu0 0.0
  %182 = vmatpush1.msra.mxu0 0.0
  %183 = vmatprep.subr.mxu0 0.0
  %184 = vmatpush1.msra.mxu0 0.0
  %185 = vmatprep.subr.mxu0 0.0
  %186 = vmatpush1.msra.mxu0 0.0
  %187 = vmatprep.subr.mxu0 0.0
  %188 = vmatpush1.msra.mxu0 0.0
  %189 = vmatprep.subr.mxu0 0.0
  %190 = vmatpush1.msra.mxu0 0.0
  %191 = vmatprep.subr.mxu0 0.0
  %192 = vmatpush1.msra.mxu0 0.0
  %193 = vmatprep.subr.mxu0 0.0
  %194 = vmatpush1.msra.mxu0 0.0
  %195 = vmatprep.subr.mxu0 0.0
  %196 = vmatpush1.msra.mxu0 0.0
  %197 = vmatprep.subr.mxu0 0.0
  %198 = vmatpush1.msra.mxu0 0.0
  %199 = vmatprep.subr.mxu0 0.0
  %200 = vmatpush1.msra.mxu0 0.0
  %201 = vmatprep.subr.mxu0 0.0
  %202 = vmatpush1.msra.mxu0 0.0
  %203 = vmatprep.subr.mxu0 0.0
  %204 = vmatpush1.msra.mxu0 0.0
  %205 = vmatprep.subr.mxu0 0.0
  %206 = vmatpush1.msra.mxu0 0.0
  %207 = vmatprep.subr.mxu0 0.0
  %208 = vmatpush1.msra.mxu0 0.0
  %209 = vmatprep.mubr.f32.mxu0 0.0
  %210 = vmatmul.mubr.f32.gmra.mrb[0].mxu0 %v137
  %v211 = vpop.f32.mrb[0].mxu0
  %v212 = vadd.f32 %v133, %v211
  %v213 = vpop.f32.mrb[0].mxu0
  %v214 = vadd.f32 %v133, %v213
  %215 = vdwg.mxu0
  %216 = vmatprep.subr.mxu0 0.0
  %217 = vmatpush1.msra.mxu0 %v120
  %218 = vmatprep.subr.mxu0 0.0
  %219 = vmatpush1.msra.mxu0 %v123
  %220 = vmatprep.subr.mxu0 0.0
  %221 = vmatpush1.msra.mxu0 %v126
  %222 = vmatprep.subr.mxu0 0.0
  %223 = vmatpush1.msra.mxu0 %v129
  %224 = vmatprep.subr.mxu0 0.0
  %225 = vmatpush1.msra.mxu0 %v143
  %226 = vmatprep.subr.mxu0 0.0
  %227 = vmatpush1.msra.mxu0 0.0
  %228 = vmatprep.subr.mxu0 0.0
  %229 = vmatpush1.msra.mxu0 0.0
  %230 = vmatprep.subr.mxu0 0.0
  %231 = vmatpush1.msra.mxu0 0.0
  %232 = vmatprep.subr.mxu0 0.0
  %233 = vmatpush1.msra.mxu0 0.0
  %234 = vmatprep.subr.mxu0 0.0
  %235 = vmatpush1.msra.mxu0 0.0
  %236 = vmatprep.subr.mxu0 0.0
  %237 = vmatpush1.msra.mxu0 0.0
  %238 = vmatprep.subr.mxu0 0.0
  %239 = vmatpush1.msra.mxu0 0.0
  %240 = vmatprep.subr.mxu0 0.0
  %241 = vmatpush1.msra.mxu0 0.0
  %242 = vmatprep.subr.mxu0 0.0
  %243 = vmatpush1.msra.mxu0 0.0
  %244 = vmatprep.subr.mxu0 0.0
  %245 = vmatpush1.msra.mxu0 0.0
  %246 = vmatprep.subr.mxu0 0.0
  %247 = vmatpush1.msra.mxu0 0.0
  %248 = vmatprep.subr.mxu0 0.0
  %249 = vmatpush1.msra.mxu0 0.0
  %250 = vmatprep.subr.mxu0 0.0
  %251 = vmatpush1.msra.mxu0 0.0
  %252 = vmatprep.subr.mxu0 0.0
  %253 = vmatpush1.msra.mxu0 0.0
  %254 = vmatprep.subr.mxu0 0.0
  %255 = vmatpush1.msra.mxu0 0.0
  %256 = vmatprep.subr.mxu0 0.0
  %257 = vmatpush1.msra.mxu0 0.0
  %258 = vmatprep.subr.mxu0 0.0
  %259 = vmatpush1.msra.mxu0 0.0
  %260 = vmatprep.subr.mxu0 0.0
  %261 = vmatpush1.msra.mxu0 0.0
  %262 = vmatprep.subr.mxu0 0.0
  %263 = vmatpush1.msra.mxu0 0.0
  %264 = vmatprep.subr.mxu0 0.0
  %265 = vmatpush1.msra.mxu0 0.0
  %266 = vmatprep.subr.mxu0 0.0
  %267 = vmatpush1.msra.mxu0 0.0
  %268 = vmatprep.subr.mxu0 0.0
  %269 = vmatpush1.msra.mxu0 0.0
  %270 = vmatprep.subr.mxu0 0.0
  %271 = vmatpush1.msra.mxu0 0.0
  %272 = vmatprep.subr.mxu0 0.0
  %273 = vmatpush1.msra.mxu0 0.0
  %274 = vmatprep.subr.mxu0 0.0
  %275 = vmatpush1.msra.mxu0 0.0
  %276 = vmatprep.subr.mxu0 0.0
  %277 = vmatpush1.msra.mxu0 0.0
  %278 = vmatprep.subr.mxu0 0.0
  %279 = vmatpush1.msra.mxu0 0.0
  %280 = vmatprep.mubr.f32.mxu0 0.0
  %281 = vmatmul.mubr.f32.gmra.mrb[0].mxu0 %v137
  %v282 = vpop.f32.mrb[0].mxu0
  %v283 = vadd.f32 %v133, %v282
  %v284 = vpop.f32.mrb[0].mxu0
  %285 = vdwg.mxu0
  %287 = vrot.lane.b32.xlu0 %v212, 110
  %v288 = vpop.permute.xlu0 %287
  %290 = vrot.lane.b32.xlu0 %v212, 92
  %v291 = vpop.permute.xlu0 %290
  %293 = vrot.lane.b32.xlu0 %v212, 74
  %v294 = vpop.permute.xlu0 %293
  %296 = vrot.lane.b32.xlu0 %v212, 56
  %v297 = vpop.permute.xlu0 %296
  %299 = vrot.lane.b32.xlu0 %v212, 38
  %v300 = vpop.permute.xlu0 %299
  %302 = vrot.lane.b32.xlu0 %v212, 20
  %v303 = vpop.permute.xlu0 %302
  %306 = vrot.lane.b32.xlu0 %v212, 2
  %v307 = vpop.permute.xlu0 %306
  %308 = vrot.lane.b32.xlu0 %v214, 2
  %v309 = vpop.permute.xlu0 %308
  %vm310 = vcmask 15360
  %v311 = vsel %vm310, %v307, %v309
  %313 = vrot.lane.b32.xlu0 %v214, 112
  %v314 = vpop.permute.xlu0 %313
  %316 = vrot.lane.b32.xlu0 %v214, 94
  %v317 = vpop.permute.xlu0 %316
  %319 = vrot.lane.b32.xlu0 %v214, 76
  %v320 = vpop.permute.xlu0 %319
  %322 = vrot.lane.b32.xlu0 %v214, 58
  %v323 = vpop.permute.xlu0 %322
  %325 = vrot.lane.b32.xlu0 %v214, 40
  %v326 = vpop.permute.xlu0 %325
  %328 = vrot.lane.b32.xlu0 %v214, 22
  %v329 = vpop.permute.xlu0 %328
  %332 = vrot.lane.b32.xlu0 %v214, 4
  %v333 = vpop.permute.xlu0 %332
  %334 = vrot.lane.b32.xlu0 %v283, 4
  %v335 = vpop.permute.xlu0 %334
  %vm336 = vcmask 31744
  %v337 = vsel %vm336, %v333, %v335
  %339 = vrot.lane.b32.xlu0 %v283, 114
  %v340 = vpop.permute.xlu0 %339
  %v342 = vcombine.low %v212, %v291
  %v343 = vcombine.high %v212, %v291
  %v345 = vunpack.c.l.s4 1983009808
  %v346 = vunpack.c.0.s8 %v345
  %v347 = vlaneseq
  %v348 = vshrl.u32 %v347, 7
  %v349 = vsub.s32 %v346, %v348
  %v350 = vrot.slane %v342, %v349
  %v352 = vunpack.c.l.s4 1983009808
  %v353 = vunpack.c.0.s8 %v352
  %v354 = vlaneseq
  %v355 = vshrl.u32 %v354, 7
  %v356 = vsub.s32 %v353, %v355
  %v357 = vrot.slane %v343, %v356
  %v358 = vcombine.low %v288, %v294
  %v359 = vcombine.high %v288, %v294
  %v361 = vunpack.c.l.s4 1983009808
  %v362 = vunpack.c.0.s8 %v361
  %v363 = vlaneseq
  %v364 = vshrl.u32 %v363, 7
  %v365 = vsub.s32 %v362, %v364
  %v366 = vrot.slane %v358, %v365
  %v368 = vunpack.c.l.s4 1983009808
  %v369 = vunpack.c.0.s8 %v368
  %v370 = vlaneseq
  %v371 = vshrl.u32 %v370, 7
  %v372 = vsub.s32 %v369, %v371
  %v373 = vrot.slane %v359, %v372
  %v374 = vcombine.low %v297, %v303
  %v375 = vcombine.high %v297, %v303
  %v377 = vunpack.c.l.s4 1983009808
  %v378 = vunpack.c.0.s8 %v377
  %v379 = vlaneseq
  %v380 = vshrl.u32 %v379, 7
  %v381 = vsub.s32 %v378, %v380
  %v382 = vrot.slane %v374, %v381
  %v384 = vunpack.c.l.s4 1983009808
  %v385 = vunpack.c.0.s8 %v384
  %v386 = vlaneseq
  %v387 = vshrl.u32 %v386, 7
  %v388 = vsub.s32 %v385, %v387
  %v389 = vrot.slane %v375, %v388
  %v390 = vcombine.low %v300, %v311
  %v391 = vcombine.high %v300, %v311
  %v393 = vunpack.c.l.s4 1983009808
  %v394 = vunpack.c.0.s8 %v393
  %v395 = vlaneseq
  %v396 = vshrl.u32 %v395, 7
  %v397 = vsub.s32 %v394, %v396
  %v398 = vrot.slane %v390, %v397
  %v400 = vunpack.c.l.s4 1983009808
  %v401 = vunpack.c.0.s8 %v400
  %v402 = vlaneseq
  %v403 = vshrl.u32 %v402, 7
  %v404 = vsub.s32 %v401, %v403
  %v405 = vrot.slane %v391, %v404
  %v406 = vcombine.low %v350, %v366
  %v407 = vcombine.high %v350, %v366
  %v409 = vunpack.c.l.s4 1934713408
  %v410 = vunpack.c.0.s8 %v409
  %v411 = vlaneseq
  %v412 = vshrl.u32 %v411, 7
  %v413 = vsub.s32 %v410, %v412
  %v414 = vrot.slane %v406, %v413
  %v416 = vunpack.c.l.s4 1934713408
  %v417 = vunpack.c.0.s8 %v416
  %v418 = vlaneseq
  %v419 = vshrl.u32 %v418, 7
  %v420 = vsub.s32 %v417, %v419
  %v421 = vrot.slane %v407, %v420
  %v422 = vcombine.low %v357, %v373
  %v423 = vcombine.high %v357, %v373
  %v425 = vunpack.c.l.s4 1934713408
  %v426 = vunpack.c.0.s8 %v425
  %v427 = vlaneseq
  %v428 = vshrl.u32 %v427, 7
  %v429 = vsub.s32 %v426, %v428
  %v430 = vrot.slane %v422, %v429
  %v432 = vunpack.c.l.s4 1934713408
  %v433 = vunpack.c.0.s8 %v432
  %v434 = vlaneseq
  %v435 = vshrl.u32 %v434, 7
  %v436 = vsub.s32 %v433, %v435
  %v437 = vrot.slane %v423, %v436
  %v438 = vcombine.low %v382, %v398
  %v439 = vcombine.high %v382, %v398
  %v441 = vunpack.c.l.s4 1934713408
  %v442 = vunpack.c.0.s8 %v441
  %v443 = vlaneseq
  %v444 = vshrl.u32 %v443, 7
  %v445 = vsub.s32 %v442, %v444
  %v446 = vrot.slane %v438, %v445
  %v448 = vunpack.c.l.s4 1934713408
  %v449 = vunpack.c.0.s8 %v448
  %v450 = vlaneseq
  %v451 = vshrl.u32 %v450, 7
  %v452 = vsub.s32 %v449, %v451
  %v453 = vrot.slane %v439, %v452
  %v454 = vcombine.low %v389, %v405
  %v455 = vcombine.high %v389, %v405
  %v457 = vunpack.c.l.s4 1934713408
  %v458 = vunpack.c.0.s8 %v457
  %v459 = vlaneseq
  %v460 = vshrl.u32 %v459, 7
  %v461 = vsub.s32 %v458, %v460
  %v462 = vrot.slane %v454, %v461
  %v464 = vunpack.c.l.s4 1934713408
  %v465 = vunpack.c.0.s8 %v464
  %v466 = vlaneseq
  %v467 = vshrl.u32 %v466, 7
  %v468 = vsub.s32 %v465, %v467
  %v469 = vrot.slane %v455, %v468
  %v470 = vcombine.low %v414, %v446
  %v471 = vcombine.high %v414, %v446
  %v472 = vcombine.low %v421, %v453
  %v473 = vcombine.high %v421, %v453
  %v474 = vcombine.low %v430, %v462
  %v475 = vcombine.high %v430, %v462
  %v476 = vcombine.low %v437, %v469
  %v477 = vcombine.high %v437, %v469
  %v478 = vcombine.low %v314, %v320
  %v479 = vcombine.high %v314, %v320
  %v481 = vunpack.c.l.s4 1983009808
  %v482 = vunpack.c.0.s8 %v481
  %v483 = vlaneseq
  %v484 = vshrl.u32 %v483, 7
  %v485 = vsub.s32 %v482, %v484
  %v486 = vrot.slane %v478, %v485
  %v488 = vunpack.c.l.s4 1983009808
  %v489 = vunpack.c.0.s8 %v488
  %v490 = vlaneseq
  %v491 = vshrl.u32 %v490, 7
  %v492 = vsub.s32 %v489, %v491
  %v493 = vrot.slane %v479, %v492
  %v494 = vcombine.low %v317, %v323
  %v495 = vcombine.high %v317, %v323
  %v497 = vunpack.c.l.s4 1983009808
  %v498 = vunpack.c.0.s8 %v497
  %v499 = vlaneseq
  %v500 = vshrl.u32 %v499, 7
  %v501 = vsub.s32 %v498, %v500
  %v502 = vrot.slane %v494, %v501
  %v504 = vunpack.c.l.s4 1983009808
  %v505 = vunpack.c.0.s8 %v504
  %v506 = vlaneseq
  %v507 = vshrl.u32 %v506, 7
  %v508 = vsub.s32 %v505, %v507
  %v509 = vrot.slane %v495, %v508
  %v510 = vcombine.low %v326, %v337
  %v511 = vcombine.high %v326, %v337
  %v513 = vunpack.c.l.s4 1983009808
  %v514 = vunpack.c.0.s8 %v513
  %v515 = vlaneseq
  %v516 = vshrl.u32 %v515, 7
  %v517 = vsub.s32 %v514, %v516
  %v518 = vrot.slane %v510, %v517
  %v520 = vunpack.c.l.s4 1983009808
  %v521 = vunpack.c.0.s8 %v520
  %v522 = vlaneseq
  %v523 = vshrl.u32 %v522, 7
  %v524 = vsub.s32 %v521, %v523
  %v525 = vrot.slane %v511, %v524
  %v526 = vcombine.low %v329, %v340
  %v527 = vcombine.high %v329, %v340
  %v529 = vunpack.c.l.s4 1983009808
  %v530 = vunpack.c.0.s8 %v529
  %v531 = vlaneseq
  %v532 = vshrl.u32 %v531, 7
  %v533 = vsub.s32 %v530, %v532
  %v534 = vrot.slane %v526, %v533
  %v536 = vunpack.c.l.s4 1983009808
  %v537 = vunpack.c.0.s8 %v536
  %v538 = vlaneseq
  %v539 = vshrl.u32 %v538, 7
  %v540 = vsub.s32 %v537, %v539
  %v541 = vrot.slane %v527, %v540
  %v542 = vcombine.low %v486, %v502
  %v543 = vcombine.high %v486, %v502
  %v545 = vunpack.c.l.s4 1934713408
  %v546 = vunpack.c.0.s8 %v545
  %v547 = vlaneseq
  %v548 = vshrl.u32 %v547, 7
  %v549 = vsub.s32 %v546, %v548
  %v550 = vrot.slane %v542, %v549
  %v552 = vunpack.c.l.s4 1934713408
  %v553 = vunpack.c.0.s8 %v552
  %v554 = vlaneseq
  %v555 = vshrl.u32 %v554, 7
  %v556 = vsub.s32 %v553, %v555
  %v557 = vrot.slane %v543, %v556
  %v558 = vcombine.low %v493, %v509
  %v559 = vcombine.high %v493, %v509
  %v561 = vunpack.c.l.s4 1934713408
  %v562 = vunpack.c.0.s8 %v561
  %v563 = vlaneseq
  %v564 = vshrl.u32 %v563, 7
  %v565 = vsub.s32 %v562, %v564
  %v566 = vrot.slane %v558, %v565
  %v568 = vunpack.c.l.s4 1934713408
  %v569 = vunpack.c.0.s8 %v568
  %v570 = vlaneseq
  %v571 = vshrl.u32 %v570, 7
  %v572 = vsub.s32 %v569, %v571
  %v573 = vrot.slane %v559, %v572
  %v574 = vcombine.low %v518, %v534
  %v575 = vcombine.high %v518, %v534
  %v577 = vunpack.c.l.s4 1934713408
  %v578 = vunpack.c.0.s8 %v577
  %v579 = vlaneseq
  %v580 = vshrl.u32 %v579, 7
  %v581 = vsub.s32 %v578, %v580
  %v582 = vrot.slane %v574, %v581
  %v584 = vunpack.c.l.s4 1934713408
  %v585 = vunpack.c.0.s8 %v584
  %v586 = vlaneseq
  %v587 = vshrl.u32 %v586, 7
  %v588 = vsub.s32 %v585, %v587
  %v589 = vrot.slane %v575, %v588
  %v590 = vcombine.low %v525, %v541
  %v591 = vcombine.high %v525, %v541
  %v593 = vunpack.c.l.s4 1934713408
  %v594 = vunpack.c.0.s8 %v593
  %v595 = vlaneseq
  %v596 = vshrl.u32 %v595, 7
  %v597 = vsub.s32 %v594, %v596
  %v598 = vrot.slane %v590, %v597
  %v600 = vunpack.c.l.s4 1934713408
  %v601 = vunpack.c.0.s8 %v600
  %v602 = vlaneseq
  %v603 = vshrl.u32 %v602, 7
  %v604 = vsub.s32 %v601, %v603
  %v605 = vrot.slane %v591, %v604
  %v606 = vcombine.low %v550, %v582
  %v607 = vcombine.high %v550, %v582
  %v608 = vcombine.low %v557, %v589
  %v609 = vcombine.high %v557, %v589
  %v610 = vcombine.low %v566, %v598
  %v611 = vcombine.high %v566, %v598
  %v612 = vcombine.low %v573, %v605
  %v613 = vcombine.high %v573, %v605
  %v614 = vcombine.low %v470, %v472
  %v615 = vcombine.high %v470, %v472
  %v617 = vunpack.c.l.s4 1983009808
  %v618 = vunpack.c.0.s8 %v617
  %v619 = vlaneseq
  %v620 = vshrl.u32 %v619, 7
  %v621 = vsub.s32 %v618, %v620
  %v622 = vrot.slane %v614, %v621
  %v624 = vunpack.c.l.s4 1983009808
  %v625 = vunpack.c.0.s8 %v624
  %v626 = vlaneseq
  %v627 = vshrl.u32 %v626, 7
  %v628 = vsub.s32 %v625, %v627
  %v629 = vrot.slane %v615, %v628
  %v630 = vcombine.low %v471, %v473
  %v631 = vcombine.high %v471, %v473
  %v633 = vunpack.c.l.s4 1983009808
  %v634 = vunpack.c.0.s8 %v633
  %v635 = vlaneseq
  %v636 = vshrl.u32 %v635, 7
  %v637 = vsub.s32 %v634, %v636
  %v638 = vrot.slane %v630, %v637
  %v640 = vunpack.c.l.s4 1983009808
  %v641 = vunpack.c.0.s8 %v640
  %v642 = vlaneseq
  %v643 = vshrl.u32 %v642, 7
  %v644 = vsub.s32 %v641, %v643
  %v645 = vrot.slane %v631, %v644
  %v646 = vcombine.low %v474, %v476
  %v647 = vcombine.high %v474, %v476
  %v649 = vunpack.c.l.s4 1983009808
  %v650 = vunpack.c.0.s8 %v649
  %v651 = vlaneseq
  %v652 = vshrl.u32 %v651, 7
  %v653 = vsub.s32 %v650, %v652
  %v654 = vrot.slane %v646, %v653
  %v656 = vunpack.c.l.s4 1983009808
  %v657 = vunpack.c.0.s8 %v656
  %v658 = vlaneseq
  %v659 = vshrl.u32 %v658, 7
  %v660 = vsub.s32 %v657, %v659
  %v661 = vrot.slane %v647, %v660
  %v662 = vcombine.low %v475, %v477
  %v663 = vcombine.high %v475, %v477
  %v665 = vunpack.c.l.s4 1983009808
  %v666 = vunpack.c.0.s8 %v665
  %v667 = vlaneseq
  %v668 = vshrl.u32 %v667, 7
  %v669 = vsub.s32 %v666, %v668
  %v670 = vrot.slane %v662, %v669
  %v672 = vunpack.c.l.s4 1983009808
  %v673 = vunpack.c.0.s8 %v672
  %v674 = vlaneseq
  %v675 = vshrl.u32 %v674, 7
  %v676 = vsub.s32 %v673, %v675
  %v677 = vrot.slane %v663, %v676
  %v678 = vcombine.low %v622, %v638
  %v679 = vcombine.high %v622, %v638
  %v681 = vunpack.c.l.s4 1934713408
  %v682 = vunpack.c.0.s8 %v681
  %v683 = vlaneseq
  %v684 = vshrl.u32 %v683, 7
  %v685 = vsub.s32 %v682, %v684
  %v686 = vrot.slane %v678, %v685
  %v688 = vunpack.c.l.s4 1934713408
  %v689 = vunpack.c.0.s8 %v688
  %v690 = vlaneseq
  %v691 = vshrl.u32 %v690, 7
  %v692 = vsub.s32 %v689, %v691
  %v693 = vrot.slane %v679, %v692
  %v694 = vcombine.low %v629, %v645
  %v695 = vcombine.high %v629, %v645
  %v697 = vunpack.c.l.s4 1934713408
  %v698 = vunpack.c.0.s8 %v697
  %v699 = vlaneseq
  %v700 = vshrl.u32 %v699, 7
  %v701 = vsub.s32 %v698, %v700
  %v702 = vrot.slane %v694, %v701
  %v704 = vunpack.c.l.s4 1934713408
  %v705 = vunpack.c.0.s8 %v704
  %v706 = vlaneseq
  %v707 = vshrl.u32 %v706, 7
  %v708 = vsub.s32 %v705, %v707
  %v709 = vrot.slane %v695, %v708
  %v710 = vcombine.low %v654, %v670
  %v711 = vcombine.high %v654, %v670
  %v713 = vunpack.c.l.s4 1934713408
  %v714 = vunpack.c.0.s8 %v713
  %v715 = vlaneseq
  %v716 = vshrl.u32 %v715, 7
  %v717 = vsub.s32 %v714, %v716
  %v718 = vrot.slane %v710, %v717
  %v720 = vunpack.c.l.s4 1934713408
  %v721 = vunpack.c.0.s8 %v720
  %v722 = vlaneseq
  %v723 = vshrl.u32 %v722, 7
  %v724 = vsub.s32 %v721, %v723
  %v725 = vrot.slane %v711, %v724
  %v726 = vcombine.low %v661, %v677
  %v727 = vcombine.high %v661, %v677
  %v729 = vunpack.c.l.s4 1934713408
  %v730 = vunpack.c.0.s8 %v729
  %v731 = vlaneseq
  %v732 = vshrl.u32 %v731, 7
  %v733 = vsub.s32 %v730, %v732
  %v734 = vrot.slane %v726, %v733
  %v736 = vunpack.c.l.s4 1934713408
  %v737 = vunpack.c.0.s8 %v736
  %v738 = vlaneseq
  %v739 = vshrl.u32 %v738, 7
  %v740 = vsub.s32 %v737, %v739
  %v741 = vrot.slane %v727, %v740
  %v742 = vcombine.low %v686, %v718
  %v743 = vcombine.high %v686, %v718
  %v744 = vcombine.low %v693, %v725
  %v745 = vcombine.high %v693, %v725
  %v746 = vcombine.low %v702, %v734
  %v747 = vcombine.high %v702, %v734
  %v748 = vcombine.low %v709, %v741
  %v749 = vcombine.high %v709, %v741
  %v750 = vcombine.low %v606, %v608
  %v751 = vcombine.high %v606, %v608
  %v753 = vunpack.c.l.s4 1983009808
  %v754 = vunpack.c.0.s8 %v753
  %v755 = vlaneseq
  %v756 = vshrl.u32 %v755, 7
  %v757 = vsub.s32 %v754, %v756
  %v758 = vrot.slane %v750, %v757
  %v760 = vunpack.c.l.s4 1983009808
  %v761 = vunpack.c.0.s8 %v760
  %v762 = vlaneseq
  %v763 = vshrl.u32 %v762, 7
  %v764 = vsub.s32 %v761, %v763
  %v765 = vrot.slane %v751, %v764
  %v766 = vcombine.low %v607, %v609
  %v767 = vcombine.high %v607, %v609
  %v769 = vunpack.c.l.s4 1983009808
  %v770 = vunpack.c.0.s8 %v769
  %v771 = vlaneseq
  %v772 = vshrl.u32 %v771, 7
  %v773 = vsub.s32 %v770, %v772
  %v774 = vrot.slane %v766, %v773
  %v776 = vunpack.c.l.s4 1983009808
  %v777 = vunpack.c.0.s8 %v776
  %v778 = vlaneseq
  %v779 = vshrl.u32 %v778, 7
  %v780 = vsub.s32 %v777, %v779
  %v781 = vrot.slane %v767, %v780
  %v782 = vcombine.low %v610, %v612
  %v783 = vcombine.high %v610, %v612
  %v785 = vunpack.c.l.s4 1983009808
  %v786 = vunpack.c.0.s8 %v785
  %v787 = vlaneseq
  %v788 = vshrl.u32 %v787, 7
  %v789 = vsub.s32 %v786, %v788
  %v790 = vrot.slane %v782, %v789
  %v792 = vunpack.c.l.s4 1983009808
  %v793 = vunpack.c.0.s8 %v792
  %v794 = vlaneseq
  %v795 = vshrl.u32 %v794, 7
  %v796 = vsub.s32 %v793, %v795
  %v797 = vrot.slane %v783, %v796
  %v798 = vcombine.low %v611, %v613
  %v799 = vcombine.high %v611, %v613
  %v801 = vunpack.c.l.s4 1983009808
  %v802 = vunpack.c.0.s8 %v801
  %v803 = vlaneseq
  %v804 = vshrl.u32 %v803, 7
  %v805 = vsub.s32 %v802, %v804
  %v806 = vrot.slane %v798, %v805
  %v808 = vunpack.c.l.s4 1983009808
  %v809 = vunpack.c.0.s8 %v808
  %v810 = vlaneseq
  %v811 = vshrl.u32 %v810, 7
  %v812 = vsub.s32 %v809, %v811
  %v813 = vrot.slane %v799, %v812
  %v814 = vcombine.low %v758, %v774
  %v815 = vcombine.high %v758, %v774
  %v817 = vunpack.c.l.s4 1934713408
  %v818 = vunpack.c.0.s8 %v817
  %v819 = vlaneseq
  %v820 = vshrl.u32 %v819, 7
  %v821 = vsub.s32 %v818, %v820
  %v822 = vrot.slane %v814, %v821
  %v824 = vunpack.c.l.s4 1934713408
  %v825 = vunpack.c.0.s8 %v824
  %v826 = vlaneseq
  %v827 = vshrl.u32 %v826, 7
  %v828 = vsub.s32 %v825, %v827
  %v829 = vrot.slane %v815, %v828
  %v830 = vcombine.low %v765, %v781
  %v831 = vcombine.high %v765, %v781
  %v833 = vunpack.c.l.s4 1934713408
  %v834 = vunpack.c.0.s8 %v833
  %v835 = vlaneseq
  %v836 = vshrl.u32 %v835, 7
  %v837 = vsub.s32 %v834, %v836
  %v838 = vrot.slane %v830, %v837
  %v840 = vunpack.c.l.s4 1934713408
  %v841 = vunpack.c.0.s8 %v840
  %v842 = vlaneseq
  %v843 = vshrl.u32 %v842, 7
  %v844 = vsub.s32 %v841, %v843
  %v845 = vrot.slane %v831, %v844
  %v846 = vcombine.low %v790, %v806
  %v847 = vcombine.high %v790, %v806
  %v849 = vunpack.c.l.s4 1934713408
  %v850 = vunpack.c.0.s8 %v849
  %v851 = vlaneseq
  %v852 = vshrl.u32 %v851, 7
  %v853 = vsub.s32 %v850, %v852
  %v854 = vrot.slane %v846, %v853
  %v856 = vunpack.c.l.s4 1934713408
  %v857 = vunpack.c.0.s8 %v856
  %v858 = vlaneseq
  %v859 = vshrl.u32 %v858, 7
  %v860 = vsub.s32 %v857, %v859
  %v861 = vrot.slane %v847, %v860
  %v862 = vcombine.low %v797, %v813
  %v863 = vcombine.high %v797, %v813
  %v865 = vunpack.c.l.s4 1934713408
  %v866 = vunpack.c.0.s8 %v865
  %v867 = vlaneseq
  %v868 = vshrl.u32 %v867, 7
  %v869 = vsub.s32 %v866, %v868
  %v870 = vrot.slane %v862, %v869
  %v872 = vunpack.c.l.s4 1934713408
  %v873 = vunpack.c.0.s8 %v872
  %v874 = vlaneseq
  %v875 = vshrl.u32 %v874, 7
  %v876 = vsub.s32 %v873, %v875
  %v877 = vrot.slane %v863, %v876
  %v878 = vcombine.low %v822, %v854
  %v879 = vcombine.high %v822, %v854
  %v880 = vcombine.low %v829, %v861
  %v881 = vcombine.high %v829, %v861
  %v882 = vcombine.low %v838, %v870
  %v883 = vcombine.high %v838, %v870
  %v884 = vcombine.low %v845, %v877
  %v885 = vcombine.high %v845, %v877
  %887 = vrot.lane.b32.xlu0 %v743, 16
  %v888 = vpop.permute.xlu0 %887
  %891 = vrot.lane.b32.xlu0 %v744, 32
  %v892 = vpop.permute.xlu0 %891
  %895 = vrot.lane.b32.xlu0 %v745, 48
  %v896 = vpop.permute.xlu0 %895
  %899 = vrot.lane.b32.xlu0 %v746, 64
  %v900 = vpop.permute.xlu0 %899
  %903 = vrot.lane.b32.xlu0 %v747, 80
  %v904 = vpop.permute.xlu0 %903
  %907 = vrot.lane.b32.xlu0 %v748, 96
  %v908 = vpop.permute.xlu0 %907
  %911 = vrot.lane.b32.xlu0 %v749, 112
  %v912 = vpop.permute.xlu0 %911
  %915 = vrot.lane.b32.xlu0 %v879, 16
  %v916 = vpop.permute.xlu0 %915
  %919 = vrot.lane.b32.xlu0 %v880, 32
  %v920 = vpop.permute.xlu0 %919
  %923 = vrot.lane.b32.xlu0 %v881, 48
  %v924 = vpop.permute.xlu0 %923
  %927 = vrot.lane.b32.xlu0 %v882, 64
  %v928 = vpop.permute.xlu0 %927
  %931 = vrot.lane.b32.xlu0 %v883, 80
  %v932 = vpop.permute.xlu0 %931
  %935 = vrot.lane.b32.xlu0 %v884, 96
  %v936 = vpop.permute.xlu0 %935
  %939 = vrot.lane.b32.xlu0 %v885, 112
  %v940 = vpop.permute.xlu0 %939
  %vm942 = vcmask 130048
  %v943 = vsel %vm942, %v742, %v888
  %vm944 = vcmask 261120
  %v945 = vsel %vm944, %v943, %v892
  %vm946 = vcmask 392192
  %v947 = vsel %vm946, %v945, %v896
  %vm948 = vcmask 523264
  %v949 = vsel %vm948, %v947, %v900
  %vm950 = vcmask 654336
  %v951 = vsel %vm950, %v949, %v904
  %vm952 = vcmask 785408
  %v953 = vsel %vm952, %v951, %v908
  %vm954 = vcmask 916480
  %v955 = vsel %vm954, %v953, %v912
  %v956 = vsel %vm942, %v878, %v916
  %v957 = vsel %vm944, %v956, %v920
  %v958 = vsel %vm946, %v957, %v924
  %v959 = vsel %vm948, %v958, %v928
  %v960 = vsel %vm950, %v959, %v932
  %v961 = vsel %vm952, %v960, %v936
  %v962 = vsel %vm954, %v961, %v940
  %963 = vst [vmem:[%s3] sm:$0xff] %v955
  %964 = vst [vmem:[%s3 + $0x8] sm:$0xff] %v962
  %s965 = scalar_lea.vmem %s0, 12
  %v966 = vld [vmem:[%s965] sm:$0xff]
  %v967 = vld [vmem:[%s965 + $0x8] sm:$0xf]
  %v970 = vcombine.high %v966, %v966
  %v972 = vcombine.low %v966, %v966
  %v973 = vcombine.low %v967, %v967
  %974 = vrot.lane.b32.xlu0 %v972, 127
  %v975 = vpop.permute.xlu0 %974
  %976 = vrot.lane.b32.xlu0 %v966, 127
  %v977 = vpop.permute.xlu0 %976
  %978 = vrot.lane.b32.xlu0 %v973, 127
  %v979 = vpop.permute.xlu0 %978
  %v980 = vsel %vm30, %v975, %v977
  %v981 = vsel %vm30, %v977, %v979
  %985 = vrot.lane.b32.xlu0 %v966, 126
  %v986 = vpop.permute.xlu0 %985
  %987 = vrot.lane.b32.xlu0 %v970, 126
  %v988 = vpop.permute.xlu0 %987
  %989 = vrot.lane.b32.xlu0 %v967, 126
  %v990 = vpop.permute.xlu0 %989
  %v991 = vsel %vm42, %v986, %v988
  %v992 = vsel %vm42, %v988, %v990
  %996 = vrot.lane.b32.xlu0 %v972, 110
  %v997 = vpop.permute.xlu0 %996
  %998 = vrot.lane.b32.xlu0 %v966, 110
  %v999 = vpop.permute.xlu0 %998
  %1000 = vrot.lane.b32.xlu0 %v973, 110
  %v1001 = vpop.permute.xlu0 %1000
  %v1002 = vsel %vm54, %v997, %v999
  %v1003 = vsel %vm54, %v999, %v1001
  %1007 = vrot.lane.b32.xlu0 %v966, 109
  %v1008 = vpop.permute.xlu0 %1007
  %1009 = vrot.lane.b32.xlu0 %v970, 109
  %v1010 = vpop.permute.xlu0 %1009
  %1011 = vrot.lane.b32.xlu0 %v967, 109
  %v1012 = vpop.permute.xlu0 %1011
  %v1013 = vsel %vm66, %v1008, %v1010
  %v1014 = vsel %vm66, %v1010, %v1012
  %1018 = vrot.lane.b32.xlu0 %v972, 108
  %v1019 = vpop.permute.xlu0 %1018
  %1020 = vrot.lane.b32.xlu0 %v966, 108
  %v1021 = vpop.permute.xlu0 %1020
  %1022 = vrot.lane.b32.xlu0 %v973, 108
  %v1023 = vpop.permute.xlu0 %1022
  %v1024 = vsel %vm78, %v1019, %v1021
  %v1025 = vsel %vm78, %v1021, %v1023
  %1029 = vrot.lane.b32.xlu0 %v966, 92
  %v1030 = vpop.permute.xlu0 %1029
  %1031 = vrot.lane.b32.xlu0 %v970, 92
  %v1032 = vpop.permute.xlu0 %1031
  %1033 = vrot.lane.b32.xlu0 %v967, 92
  %v1034 = vpop.permute.xlu0 %1033
  %v1035 = vsel %vm90, %v1030, %v1032
  %v1036 = vsel %vm90, %v1032, %v1034
  %1040 = vrot.lane.b32.xlu0 %v972, 91
  %v1041 = vpop.permute.xlu0 %1040
  %1042 = vrot.lane.b32.xlu0 %v966, 91
  %v1043 = vpop.permute.xlu0 %1042
  %1044 = vrot.lane.b32.xlu0 %v973, 91
  %v1045 = vpop.permute.xlu0 %1044
  %v1046 = vsel %vm102, %v1041, %v1043
  %v1047 = vsel %vm102, %v1043, %v1045
  %1051 = vrot.lane.b32.xlu0 %v966, 90
  %v1052 = vpop.permute.xlu0 %1051
  %1053 = vrot.lane.b32.xlu0 %v970, 90
  %v1054 = vpop.permute.xlu0 %1053
  %1055 = vrot.lane.b32.xlu0 %v967, 90
  %v1056 = vpop.permute.xlu0 %1055
  %v1057 = vsel %vm114, %v1052, %v1054
  %v1058 = vsel %vm114, %v1054, %v1056
  %v1059 = vsel %vm117, %v966, %v980
  %v1060 = vsel %vm117, %v970, %v981
  %v1061 = vsel %vm117, %v967, %v979
  %v1062 = vsel %vm117, %v991, %v1002
  %v1063 = vsel %vm117, %v992, %v1003
  %v1064 = vsel %vm117, %v990, %v1001
  %v1065 = vsel %vm117, %v1013, %v1024
  %v1066 = vsel %vm117, %v1014, %v1025
  %v1067 = vsel %vm117, %v1012, %v1023
  %v1068 = vsel %vm117, %v1035, %v1046
  %v1069 = vsel %vm117, %v1036, %v1047
  %v1070 = vsel %vm117, %v1034, %v1045
  %v1071 = vsel %vm117, %v1057, 0
  %v1073 = vsel %vm117, %v1058, 0
  %v1075 = vsel %vm117, %v1056, 0
  %1077 = vmatprep.subr.mxu0 %v1060
  %1078 = vmatpush1.msra.mxu0 %v1059
  %1079 = vmatprep.subr.mxu0 %v1063
  %1080 = vmatpush1.msra.mxu0 %v1062
  %1081 = vmatprep.subr.mxu0 %v1066
  %1082 = vmatpush1.msra.mxu0 %v1065
  %1083 = vmatprep.subr.mxu0 %v1069
  %1084 = vmatpush1.msra.mxu0 %v1068
  %1085 = vmatprep.subr.mxu0 %v1073
  %1086 = vmatpush1.msra.mxu0 %v1071
  %1087 = vmatprep.subr.mxu0 0.0
  %1088 = vmatpush1.msra.mxu0 0.0
  %1089 = vmatprep.subr.mxu0 0.0
  %1090 = vmatpush1.msra.mxu0 0.0
  %1091 = vmatprep.subr.mxu0 0.0
  %1092 = vmatpush1.msra.mxu0 0.0
  %1093 = vmatprep.subr.mxu0 0.0
  %1094 = vmatpush1.msra.mxu0 0.0
  %1095 = vmatprep.subr.mxu0 0.0
  %1096 = vmatpush1.msra.mxu0 0.0
  %1097 = vmatprep.subr.mxu0 0.0
  %1098 = vmatpush1.msra.mxu0 0.0
  %1099 = vmatprep.subr.mxu0 0.0
  %1100 = vmatpush1.msra.mxu0 0.0
  %1101 = vmatprep.subr.mxu0 0.0
  %1102 = vmatpush1.msra.mxu0 0.0
  %1103 = vmatprep.subr.mxu0 0.0
  %1104 = vmatpush1.msra.mxu0 0.0
  %1105 = vmatprep.subr.mxu0 0.0
  %1106 = vmatpush1.msra.mxu0 0.0
  %1107 = vmatprep.subr.mxu0 0.0
  %1108 = vmatpush1.msra.mxu0 0.0
  %1109 = vmatprep.subr.mxu0 0.0
  %1110 = vmatpush1.msra.mxu0 0.0
  %1111 = vmatprep.subr.mxu0 0.0
  %1112 = vmatpush1.msra.mxu0 0.0
  %1113 = vmatprep.subr.mxu0 0.0
  %1114 = vmatpush1.msra.mxu0 0.0
  %1115 = vmatprep.subr.mxu0 0.0
  %1116 = vmatpush1.msra.mxu0 0.0
  %1117 = vmatprep.subr.mxu0 0.0
  %1118 = vmatpush1.msra.mxu0 0.0
  %1119 = vmatprep.subr.mxu0 0.0
  %1120 = vmatpush1.msra.mxu0 0.0
  %1121 = vmatprep.subr.mxu0 0.0
  %1122 = vmatpush1.msra.mxu0 0.0
  %1123 = vmatprep.subr.mxu0 0.0
  %1124 = vmatpush1.msra.mxu0 0.0
  %1125 = vmatprep.subr.mxu0 0.0
  %1126 = vmatpush1.msra.mxu0 0.0
  %1127 = vmatprep.subr.mxu0 0.0
  %1128 = vmatpush1.msra.mxu0 0.0
  %1129 = vmatprep.subr.mxu0 0.0
  %1130 = vmatpush1.msra.mxu0 0.0
  %1131 = vmatprep.subr.mxu0 0.0
  %1132 = vmatpush1.msra.mxu0 0.0
  %1133 = vmatprep.subr.mxu0 0.0
  %1134 = vmatpush1.msra.mxu0 0.0
  %1135 = vmatprep.subr.mxu0 0.0
  %1136 = vmatpush1.msra.mxu0 0.0
  %1137 = vmatprep.subr.mxu0 0.0
  %1138 = vmatpush1.msra.mxu0 0.0
  %1139 = vmatprep.subr.mxu0 0.0
  %1140 = vmatpush1.msra.mxu0 0.0
  %1141 = vmatprep.mubr.f32.mxu0 0.0
  %1142 = vmatmul.mubr.f32.gmra.mrb[0].mxu0 %v137
  %v1143 = vpop.f32.mrb[0].mxu0
  %v1144 = vadd.f32 %v133, %v1143
  %v1145 = vpop.f32.mrb[0].mxu0
  %v1146 = vadd.f32 %v133, %v1145
  %1147 = vdwg.mxu0
  %1148 = vmatprep.subr.mxu0 0.0
  %1149 = vmatpush1.msra.mxu0 %v1061
  %1150 = vmatprep.subr.mxu0 0.0
  %1151 = vmatpush1.msra.mxu0 %v1064
  %1152 = vmatprep.subr.mxu0 0.0
  %1153 = vmatpush1.msra.mxu0 %v1067
  %1154 = vmatprep.subr.mxu0 0.0
  %1155 = vmatpush1.msra.mxu0 %v1070
  %1156 = vmatprep.subr.mxu0 0.0
  %1157 = vmatpush1.msra.mxu0 %v1075
  %1158 = vmatprep.subr.mxu0 0.0
  %1159 = vmatpush1.msra.mxu0 0.0
  %1160 = vmatprep.subr.mxu0 0.0
  %1161 = vmatpush1.msra.mxu0 0.0
  %1162 = vmatprep.subr.mxu0 0.0
  %1163 = vmatpush1.msra.mxu0 0.0
  %1164 = vmatprep.subr.mxu0 0.0
  %1165 = vmatpush1.msra.mxu0 0.0
  %1166 = vmatprep.subr.mxu0 0.0
  %1167 = vmatpush1.msra.mxu0 0.0
  %1168 = vmatprep.subr.mxu0 0.0
  %1169 = vmatpush1.msra.mxu0 0.0
  %1170 = vmatprep.subr.mxu0 0.0
  %1171 = vmatpush1.msra.mxu0 0.0
  %1172 = vmatprep.subr.mxu0 0.0
  %1173 = vmatpush1.msra.mxu0 0.0
  %1174 = vmatprep.subr.mxu0 0.0
  %1175 = vmatpush1.msra.mxu0 0.0
  %1176 = vmatprep.subr.mxu0 0.0
  %1177 = vmatpush1.msra.mxu0 0.0
  %1178 = vmatprep.subr.mxu0 0.0
  %1179 = vmatpush1.msra.mxu0 0.0
  %1180 = vmatprep.subr.mxu0 0.0
  %1181 = vmatpush1.msra.mxu0 0.0
  %1182 = vmatprep.subr.mxu0 0.0
  %1183 = vmatpush1.msra.mxu0 0.0
  %1184 = vmatprep.subr.mxu0 0.0
  %1185 = vmatpush1.msra.mxu0 0.0
  %1186 = vmatprep.subr.mxu0 0.0
  %1187 = vmatpush1.msra.mxu0 0.0
  %1188 = vmatprep.subr.mxu0 0.0
  %1189 = vmatpush1.msra.mxu0 0.0
  %1190 = vmatprep.subr.mxu0 0.0
  %1191 = vmatpush1.msra.mxu0 0.0
  %1192 = vmatprep.subr.mxu0 0.0
  %1193 = vmatpush1.msra.mxu0 0.0
  %1194 = vmatprep.subr.mxu0 0.0
  %1195 = vmatpush1.msra.mxu0 0.0
  %1196 = vmatprep.subr.mxu0 0.0
  %1197 = vmatpush1.msra.mxu0 0.0
  %1198 = vmatprep.subr.mxu0 0.0
  %1199 = vmatpush1.msra.mxu0 0.0
  %1200 = vmatprep.subr.mxu0 0.0
  %1201 = vmatpush1.msra.mxu0 0.0
  %1202 = vmatprep.subr.mxu0 0.0
  %1203 = vmatpush1.msra.mxu0 0.0
  %1204 = vmatprep.subr.mxu0 0.0
  %1205 = vmatpush1.msra.mxu0 0.0
  %1206 = vmatprep.subr.mxu0 0.0
  %1207 = vmatpush1.msra.mxu0 0.0
  %1208 = vmatprep.subr.mxu0 0.0
  %1209 = vmatpush1.msra.mxu0 0.0
  %1210 = vmatprep.subr.mxu0 0.0
  %1211 = vmatpush1.msra.mxu0 0.0
  %1212 = vmatprep.mubr.f32.mxu0 0.0
  %1213 = vmatmul.mubr.f32.gmra.mrb[0].mxu0 %v137
  %v1214 = vpop.f32.mrb[0].mxu0
  %v1215 = vadd.f32 %v133, %v1214
  %v1216 = vpop.f32.mrb[0].mxu0
  %1217 = vdwg.mxu0
  %1219 = vrot.lane.b32.xlu0 %v1144, 110
  %v1220 = vpop.permute.xlu0 %1219
  %1222 = vrot.lane.b32.xlu0 %v1144, 92
  %v1223 = vpop.permute.xlu0 %1222
  %1225 = vrot.lane.b32.xlu0 %v1144, 74
  %v1226 = vpop.permute.xlu0 %1225
  %1228 = vrot.lane.b32.xlu0 %v1144, 56
  %v1229 = vpop.permute.xlu0 %1228
  %1231 = vrot.lane.b32.xlu0 %v1144, 38
  %v1232 = vpop.permute.xlu0 %1231
  %1234 = vrot.lane.b32.xlu0 %v1144, 20
  %v1235 = vpop.permute.xlu0 %1234
  %1238 = vrot.lane.b32.xlu0 %v1144, 2
  %v1239 = vpop.permute.xlu0 %1238
  %1240 = vrot.lane.b32.xlu0 %v1146, 2
  %v1241 = vpop.permute.xlu0 %1240
  %v1242 = vsel %vm310, %v1239, %v1241
  %1244 = vrot.lane.b32.xlu0 %v1146, 112
  %v1245 = vpop.permute.xlu0 %1244
  %1247 = vrot.lane.b32.xlu0 %v1146, 94
  %v1248 = vpop.permute.xlu0 %1247
  %1250 = vrot.lane.b32.xlu0 %v1146, 76
  %v1251 = vpop.permute.xlu0 %1250
  %1253 = vrot.lane.b32.xlu0 %v1146, 58
  %v1254 = vpop.permute.xlu0 %1253
  %1256 = vrot.lane.b32.xlu0 %v1146, 40
  %v1257 = vpop.permute.xlu0 %1256
  %1259 = vrot.lane.b32.xlu0 %v1146, 22
  %v1260 = vpop.permute.xlu0 %1259
  %1263 = vrot.lane.b32.xlu0 %v1146, 4
  %v1264 = vpop.permute.xlu0 %1263
  %1265 = vrot.lane.b32.xlu0 %v1215, 4
  %v1266 = vpop.permute.xlu0 %1265
  %v1267 = vsel %vm336, %v1264, %v1266
  %1269 = vrot.lane.b32.xlu0 %v1215, 114
  %v1270 = vpop.permute.xlu0 %1269
  %v1272 = vcombine.low %v1144, %v1223
  %v1273 = vcombine.high %v1144, %v1223
  %v1275 = vunpack.c.l.s4 1983009808
  %v1276 = vunpack.c.0.s8 %v1275
  %v1277 = vlaneseq
  %v1278 = vshrl.u32 %v1277, 7
  %v1279 = vsub.s32 %v1276, %v1278
  %v1280 = vrot.slane %v1272, %v1279
  %v1282 = vunpack.c.l.s4 1983009808
  %v1283 = vunpack.c.0.s8 %v1282
  %v1284 = vlaneseq
  %v1285 = vshrl.u32 %v1284, 7
  %v1286 = vsub.s32 %v1283, %v1285
  %v1287 = vrot.slane %v1273, %v1286
  %v1288 = vcombine.low %v1220, %v1226
  %v1289 = vcombine.high %v1220, %v1226
  %v1291 = vunpack.c.l.s4 1983009808
  %v1292 = vunpack.c.0.s8 %v1291
  %v1293 = vlaneseq
  %v1294 = vshrl.u32 %v1293, 7
  %v1295 = vsub.s32 %v1292, %v1294
  %v1296 = vrot.slane %v1288, %v1295
  %v1298 = vunpack.c.l.s4 1983009808
  %v1299 = vunpack.c.0.s8 %v1298
  %v1300 = vlaneseq
  %v1301 = vshrl.u32 %v1300, 7
  %v1302 = vsub.s32 %v1299, %v1301
  %v1303 = vrot.slane %v1289, %v1302
  %v1304 = vcombine.low %v1229, %v1235
  %v1305 = vcombine.high %v1229, %v1235
  %v1307 = vunpack.c.l.s4 1983009808
  %v1308 = vunpack.c.0.s8 %v1307
  %v1309 = vlaneseq
  %v1310 = vshrl.u32 %v1309, 7
  %v1311 = vsub.s32 %v1308, %v1310
  %v1312 = vrot.slane %v1304, %v1311
  %v1314 = vunpack.c.l.s4 1983009808
  %v1315 = vunpack.c.0.s8 %v1314
  %v1316 = vlaneseq
  %v1317 = vshrl.u32 %v1316, 7
  %v1318 = vsub.s32 %v1315, %v1317
  %v1319 = vrot.slane %v1305, %v1318
  %v1320 = vcombine.low %v1232, %v1242
  %v1321 = vcombine.high %v1232, %v1242
  %v1323 = vunpack.c.l.s4 1983009808
  %v1324 = vunpack.c.0.s8 %v1323
  %v1325 = vlaneseq
  %v1326 = vshrl.u32 %v1325, 7
  %v1327 = vsub.s32 %v1324, %v1326
  %v1328 = vrot.slane %v1320, %v1327
  %v1330 = vunpack.c.l.s4 1983009808
  %v1331 = vunpack.c.0.s8 %v1330
  %v1332 = vlaneseq
  %v1333 = vshrl.u32 %v1332, 7
  %v1334 = vsub.s32 %v1331, %v1333
  %v1335 = vrot.slane %v1321, %v1334
  %v1336 = vcombine.low %v1280, %v1296
  %v1337 = vcombine.high %v1280, %v1296
  %v1339 = vunpack.c.l.s4 1934713408
  %v1340 = vunpack.c.0.s8 %v1339
  %v1341 = vlaneseq
  %v1342 = vshrl.u32 %v1341, 7
  %v1343 = vsub.s32 %v1340, %v1342
  %v1344 = vrot.slane %v1336, %v1343
  %v1346 = vunpack.c.l.s4 1934713408
  %v1347 = vunpack.c.0.s8 %v1346
  %v1348 = vlaneseq
  %v1349 = vshrl.u32 %v1348, 7
  %v1350 = vsub.s32 %v1347, %v1349
  %v1351 = vrot.slane %v1337, %v1350
  %v1352 = vcombine.low %v1287, %v1303
  %v1353 = vcombine.high %v1287, %v1303
  %v1355 = vunpack.c.l.s4 1934713408
  %v1356 = vunpack.c.0.s8 %v1355
  %v1357 = vlaneseq
  %v1358 = vshrl.u32 %v1357, 7
  %v1359 = vsub.s32 %v1356, %v1358
  %v1360 = vrot.slane %v1352, %v1359
  %v1362 = vunpack.c.l.s4 1934713408
  %v1363 = vunpack.c.0.s8 %v1362
  %v1364 = vlaneseq
  %v1365 = vshrl.u32 %v1364, 7
  %v1366 = vsub.s32 %v1363, %v1365
  %v1367 = vrot.slane %v1353, %v1366
  %v1368 = vcombine.low %v1312, %v1328
  %v1369 = vcombine.high %v1312, %v1328
  %v1371 = vunpack.c.l.s4 1934713408
  %v1372 = vunpack.c.0.s8 %v1371
  %v1373 = vlaneseq
  %v1374 = vshrl.u32 %v1373, 7
  %v1375 = vsub.s32 %v1372, %v1374
  %v1376 = vrot.slane %v1368, %v1375
  %v1378 = vunpack.c.l.s4 1934713408
  %v1379 = vunpack.c.0.s8 %v1378
  %v1380 = vlaneseq
  %v1381 = vshrl.u32 %v1380, 7
  %v1382 = vsub.s32 %v1379, %v1381
  %v1383 = vrot.slane %v1369, %v1382
  %v1384 = vcombine.low %v1319, %v1335
  %v1385 = vcombine.high %v1319, %v1335
  %v1387 = vunpack.c.l.s4 1934713408
  %v1388 = vunpack.c.0.s8 %v1387
  %v1389 = vlaneseq
  %v1390 = vshrl.u32 %v1389, 7
  %v1391 = vsub.s32 %v1388, %v1390
  %v1392 = vrot.slane %v1384, %v1391
  %v1394 = vunpack.c.l.s4 1934713408
  %v1395 = vunpack.c.0.s8 %v1394
  %v1396 = vlaneseq
  %v1397 = vshrl.u32 %v1396, 7
  %v1398 = vsub.s32 %v1395, %v1397
  %v1399 = vrot.slane %v1385, %v1398
  %v1400 = vcombine.low %v1344, %v1376
  %v1401 = vcombine.high %v1344, %v1376
  %v1402 = vcombine.low %v1351, %v1383
  %v1403 = vcombine.high %v1351, %v1383
  %v1404 = vcombine.low %v1360, %v1392
  %v1405 = vcombine.high %v1360, %v1392
  %v1406 = vcombine.low %v1367, %v1399
  %v1407 = vcombine.high %v1367, %v1399
  %v1408 = vcombine.low %v1245, %v1251
  %v1409 = vcombine.high %v1245, %v1251
  %v1411 = vunpack.c.l.s4 1983009808
  %v1412 = vunpack.c.0.s8 %v1411
  %v1413 = vlaneseq
  %v1414 = vshrl.u32 %v1413, 7
  %v1415 = vsub.s32 %v1412, %v1414
  %v1416 = vrot.slane %v1408, %v1415
  %v1418 = vunpack.c.l.s4 1983009808
  %v1419 = vunpack.c.0.s8 %v1418
  %v1420 = vlaneseq
  %v1421 = vshrl.u32 %v1420, 7
  %v1422 = vsub.s32 %v1419, %v1421
  %v1423 = vrot.slane %v1409, %v1422
  %v1424 = vcombine.low %v1248, %v1254
  %v1425 = vcombine.high %v1248, %v1254
  %v1427 = vunpack.c.l.s4 1983009808
  %v1428 = vunpack.c.0.s8 %v1427
  %v1429 = vlaneseq
  %v1430 = vshrl.u32 %v1429, 7
  %v1431 = vsub.s32 %v1428, %v1430
  %v1432 = vrot.slane %v1424, %v1431
  %v1434 = vunpack.c.l.s4 1983009808
  %v1435 = vunpack.c.0.s8 %v1434
  %v1436 = vlaneseq
  %v1437 = vshrl.u32 %v1436, 7
  %v1438 = vsub.s32 %v1435, %v1437
  %v1439 = vrot.slane %v1425, %v1438
  %v1440 = vcombine.low %v1257, %v1267
  %v1441 = vcombine.high %v1257, %v1267
  %v1443 = vunpack.c.l.s4 1983009808
  %v1444 = vunpack.c.0.s8 %v1443
  %v1445 = vlaneseq
  %v1446 = vshrl.u32 %v1445, 7
  %v1447 = vsub.s32 %v1444, %v1446
  %v1448 = vrot.slane %v1440, %v1447
  %v1450 = vunpack.c.l.s4 1983009808
  %v1451 = vunpack.c.0.s8 %v1450
  %v1452 = vlaneseq
  %v1453 = vshrl.u32 %v1452, 7
  %v1454 = vsub.s32 %v1451, %v1453
  %v1455 = vrot.slane %v1441, %v1454
  %v1456 = vcombine.low %v1260, %v1270
  %v1457 = vcombine.high %v1260, %v1270
  %v1459 = vunpack.c.l.s4 1983009808
  %v1460 = vunpack.c.0.s8 %v1459
  %v1461 = vlaneseq
  %v1462 = vshrl.u32 %v1461, 7
  %v1463 = vsub.s32 %v1460, %v1462
  %v1464 = vrot.slane %v1456, %v1463
  %v1466 = vunpack.c.l.s4 1983009808
  %v1467 = vunpack.c.0.s8 %v1466
  %v1468 = vlaneseq
  %v1469 = vshrl.u32 %v1468, 7
  %v1470 = vsub.s32 %v1467, %v1469
  %v1471 = vrot.slane %v1457, %v1470
  %v1472 = vcombine.low %v1416, %v1432
  %v1473 = vcombine.high %v1416, %v1432
  %v1475 = vunpack.c.l.s4 1934713408
  %v1476 = vunpack.c.0.s8 %v1475
  %v1477 = vlaneseq
  %v1478 = vshrl.u32 %v1477, 7
  %v1479 = vsub.s32 %v1476, %v1478
  %v1480 = vrot.slane %v1472, %v1479
  %v1482 = vunpack.c.l.s4 1934713408
  %v1483 = vunpack.c.0.s8 %v1482
  %v1484 = vlaneseq
  %v1485 = vshrl.u32 %v1484, 7
  %v1486 = vsub.s32 %v1483, %v1485
  %v1487 = vrot.slane %v1473, %v1486
  %v1488 = vcombine.low %v1423, %v1439
  %v1489 = vcombine.high %v1423, %v1439
  %v1491 = vunpack.c.l.s4 1934713408
  %v1492 = vunpack.c.0.s8 %v1491
  %v1493 = vlaneseq
  %v1494 = vshrl.u32 %v1493, 7
  %v1495 = vsub.s32 %v1492, %v1494
  %v1496 = vrot.slane %v1488, %v1495
  %v1498 = vunpack.c.l.s4 1934713408
  %v1499 = vunpack.c.0.s8 %v1498
  %v1500 = vlaneseq
  %v1501 = vshrl.u32 %v1500, 7
  %v1502 = vsub.s32 %v1499, %v1501
  %v1503 = vrot.slane %v1489, %v1502
  %v1504 = vcombine.low %v1448, %v1464
  %v1505 = vcombine.high %v1448, %v1464
  %v1507 = vunpack.c.l.s4 1934713408
  %v1508 = vunpack.c.0.s8 %v1507
  %v1509 = vlaneseq
  %v1510 = vshrl.u32 %v1509, 7
  %v1511 = vsub.s32 %v1508, %v1510
  %v1512 = vrot.slane %v1504, %v1511
  %v1514 = vunpack.c.l.s4 1934713408
  %v1515 = vunpack.c.0.s8 %v1514
  %v1516 = vlaneseq
  %v1517 = vshrl.u32 %v1516, 7
  %v1518 = vsub.s32 %v1515, %v1517
  %v1519 = vrot.slane %v1505, %v1518
  %v1520 = vcombine.low %v1455, %v1471
  %v1521 = vcombine.high %v1455, %v1471
  %v1523 = vunpack.c.l.s4 1934713408
  %v1524 = vunpack.c.0.s8 %v1523
  %v1525 = vlaneseq
  %v1526 = vshrl.u32 %v1525, 7
  %v1527 = vsub.s32 %v1524, %v1526
  %v1528 = vrot.slane %v1520, %v1527
  %v1530 = vunpack.c.l.s4 1934713408
  %v1531 = vunpack.c.0.s8 %v1530
  %v1532 = vlaneseq
  %v1533 = vshrl.u32 %v1532, 7
  %v1534 = vsub.s32 %v1531, %v1533
  %v1535 = vrot.slane %v1521, %v1534
  %v1536 = vcombine.low %v1480, %v1512
  %v1537 = vcombine.high %v1480, %v1512
  %v1538 = vcombine.low %v1487, %v1519
  %v1539 = vcombine.high %v1487, %v1519
  %v1540 = vcombine.low %v1496, %v1528
  %v1541 = vcombine.high %v1496, %v1528
  %v1542 = vcombine.low %v1503, %v1535
  %v1543 = vcombine.high %v1503, %v1535
  %v1544 = vcombine.low %v1400, %v1402
  %v1545 = vcombine.high %v1400, %v1402
  %v1547 = vunpack.c.l.s4 1983009808
  %v1548 = vunpack.c.0.s8 %v1547
  %v1549 = vlaneseq
  %v1550 = vshrl.u32 %v1549, 7
  %v1551 = vsub.s32 %v1548, %v1550
  %v1552 = vrot.slane %v1544, %v1551
  %v1554 = vunpack.c.l.s4 1983009808
  %v1555 = vunpack.c.0.s8 %v1554
  %v1556 = vlaneseq
  %v1557 = vshrl.u32 %v1556, 7
  %v1558 = vsub.s32 %v1555, %v1557
  %v1559 = vrot.slane %v1545, %v1558
  %v1560 = vcombine.low %v1401, %v1403
  %v1561 = vcombine.high %v1401, %v1403
  %v1563 = vunpack.c.l.s4 1983009808
  %v1564 = vunpack.c.0.s8 %v1563
  %v1565 = vlaneseq
  %v1566 = vshrl.u32 %v1565, 7
  %v1567 = vsub.s32 %v1564, %v1566
  %v1568 = vrot.slane %v1560, %v1567
  %v1570 = vunpack.c.l.s4 1983009808
  %v1571 = vunpack.c.0.s8 %v1570
  %v1572 = vlaneseq
  %v1573 = vshrl.u32 %v1572, 7
  %v1574 = vsub.s32 %v1571, %v1573
  %v1575 = vrot.slane %v1561, %v1574
  %v1576 = vcombine.low %v1404, %v1406
  %v1577 = vcombine.high %v1404, %v1406
  %v1579 = vunpack.c.l.s4 1983009808
  %v1580 = vunpack.c.0.s8 %v1579
  %v1581 = vlaneseq
  %v1582 = vshrl.u32 %v1581, 7
  %v1583 = vsub.s32 %v1580, %v1582
  %v1584 = vrot.slane %v1576, %v1583
  %v1586 = vunpack.c.l.s4 1983009808
  %v1587 = vunpack.c.0.s8 %v1586
  %v1588 = vlaneseq
  %v1589 = vshrl.u32 %v1588, 7
  %v1590 = vsub.s32 %v1587, %v1589
  %v1591 = vrot.slane %v1577, %v1590
  %v1592 = vcombine.low %v1405, %v1407
  %v1593 = vcombine.high %v1405, %v1407
  %v1595 = vunpack.c.l.s4 1983009808
  %v1596 = vunpack.c.0.s8 %v1595
  %v1597 = vlaneseq
  %v1598 = vshrl.u32 %v1597, 7
  %v1599 = vsub.s32 %v1596, %v1598
  %v1600 = vrot.slane %v1592, %v1599
  %v1602 = vunpack.c.l.s4 1983009808
  %v1603 = vunpack.c.0.s8 %v1602
  %v1604 = vlaneseq
  %v1605 = vshrl.u32 %v1604, 7
  %v1606 = vsub.s32 %v1603, %v1605
  %v1607 = vrot.slane %v1593, %v1606
  %v1608 = vcombine.low %v1552, %v1568
  %v1609 = vcombine.high %v1552, %v1568
  %v1611 = vunpack.c.l.s4 1934713408
  %v1612 = vunpack.c.0.s8 %v1611
  %v1613 = vlaneseq
  %v1614 = vshrl.u32 %v1613, 7
  %v1615 = vsub.s32 %v1612, %v1614
  %v1616 = vrot.slane %v1608, %v1615
  %v1618 = vunpack.c.l.s4 1934713408
  %v1619 = vunpack.c.0.s8 %v1618
  %v1620 = vlaneseq
  %v1621 = vshrl.u32 %v1620, 7
  %v1622 = vsub.s32 %v1619, %v1621
  %v1623 = vrot.slane %v1609, %v1622
  %v1624 = vcombine.low %v1559, %v1575
  %v1625 = vcombine.high %v1559, %v1575
  %v1627 = vunpack.c.l.s4 1934713408
  %v1628 = vunpack.c.0.s8 %v1627
  %v1629 = vlaneseq
  %v1630 = vshrl.u32 %v1629, 7
  %v1631 = vsub.s32 %v1628, %v1630
  %v1632 = vrot.slane %v1624, %v1631
  %v1634 = vunpack.c.l.s4 1934713408
  %v1635 = vunpack.c.0.s8 %v1634
  %v1636 = vlaneseq
  %v1637 = vshrl.u32 %v1636, 7
  %v1638 = vsub.s32 %v1635, %v1637
  %v1639 = vrot.slane %v1625, %v1638
  %v1640 = vcombine.low %v1584, %v1600
  %v1641 = vcombine.high %v1584, %v1600
  %v1643 = vunpack.c.l.s4 1934713408
  %v1644 = vunpack.c.0.s8 %v1643
  %v1645 = vlaneseq
  %v1646 = vshrl.u32 %v1645, 7
  %v1647 = vsub.s32 %v1644, %v1646
  %v1648 = vrot.slane %v1640, %v1647
  %v1650 = vunpack.c.l.s4 1934713408
  %v1651 = vunpack.c.0.s8 %v1650
  %v1652 = vlaneseq
  %v1653 = vshrl.u32 %v1652, 7
  %v1654 = vsub.s32 %v1651, %v1653
  %v1655 = vrot.slane %v1641, %v1654
  %v1656 = vcombine.low %v1591, %v1607
  %v1657 = vcombine.high %v1591, %v1607
  %v1659 = vunpack.c.l.s4 1934713408
  %v1660 = vunpack.c.0.s8 %v1659
  %v1661 = vlaneseq
  %v1662 = vshrl.u32 %v1661, 7
  %v1663 = vsub.s32 %v1660, %v1662
  %v1664 = vrot.slane %v1656, %v1663
  %v1666 = vunpack.c.l.s4 1934713408
  %v1667 = vunpack.c.0.s8 %v1666
  %v1668 = vlaneseq
  %v1669 = vshrl.u32 %v1668, 7
  %v1670 = vsub.s32 %v1667, %v1669
  %v1671 = vrot.slane %v1657, %v1670
  %v1672 = vcombine.low %v1616, %v1648
  %v1673 = vcombine.high %v1616, %v1648
  %v1674 = vcombine.low %v1623, %v1655
  %v1675 = vcombine.high %v1623, %v1655
  %v1676 = vcombine.low %v1632, %v1664
  %v1677 = vcombine.high %v1632, %v1664
  %v1678 = vcombine.low %v1639, %v1671
  %v1679 = vcombine.high %v1639, %v1671
  %v1680 = vcombine.low %v1536, %v1538
  %v1681 = vcombine.high %v1536, %v1538
  %v1683 = vunpack.c.l.s4 1983009808
  %v1684 = vunpack.c.0.s8 %v1683
  %v1685 = vlaneseq
  %v1686 = vshrl.u32 %v1685, 7
  %v1687 = vsub.s32 %v1684, %v1686
  %v1688 = vrot.slane %v1680, %v1687
  %v1690 = vunpack.c.l.s4 1983009808
  %v1691 = vunpack.c.0.s8 %v1690
  %v1692 = vlaneseq
  %v1693 = vshrl.u32 %v1692, 7
  %v1694 = vsub.s32 %v1691, %v1693
  %v1695 = vrot.slane %v1681, %v1694
  %v1696 = vcombine.low %v1537, %v1539
  %v1697 = vcombine.high %v1537, %v1539
  %v1699 = vunpack.c.l.s4 1983009808
  %v1700 = vunpack.c.0.s8 %v1699
  %v1701 = vlaneseq
  %v1702 = vshrl.u32 %v1701, 7
  %v1703 = vsub.s32 %v1700, %v1702
  %v1704 = vrot.slane %v1696, %v1703
  %v1706 = vunpack.c.l.s4 1983009808
  %v1707 = vunpack.c.0.s8 %v1706
  %v1708 = vlaneseq
  %v1709 = vshrl.u32 %v1708, 7
  %v1710 = vsub.s32 %v1707, %v1709
  %v1711 = vrot.slane %v1697, %v1710
  %v1712 = vcombine.low %v1540, %v1542
  %v1713 = vcombine.high %v1540, %v1542
  %v1715 = vunpack.c.l.s4 1983009808
  %v1716 = vunpack.c.0.s8 %v1715
  %v1717 = vlaneseq
  %v1718 = vshrl.u32 %v1717, 7
  %v1719 = vsub.s32 %v1716, %v1718
  %v1720 = vrot.slane %v1712, %v1719
  %v1722 = vunpack.c.l.s4 1983009808
  %v1723 = vunpack.c.0.s8 %v1722
  %v1724 = vlaneseq
  %v1725 = vshrl.u32 %v1724, 7
  %v1726 = vsub.s32 %v1723, %v1725
  %v1727 = vrot.slane %v1713, %v1726
  %v1728 = vcombine.low %v1541, %v1543
  %v1729 = vcombine.high %v1541, %v1543
  %v1731 = vunpack.c.l.s4 1983009808
  %v1732 = vunpack.c.0.s8 %v1731
  %v1733 = vlaneseq
  %v1734 = vshrl.u32 %v1733, 7
  %v1735 = vsub.s32 %v1732, %v1734
  %v1736 = vrot.slane %v1728, %v1735
  %v1738 = vunpack.c.l.s4 1983009808
  %v1739 = vunpack.c.0.s8 %v1738
  %v1740 = vlaneseq
  %v1741 = vshrl.u32 %v1740, 7
  %v1742 = vsub.s32 %v1739, %v1741
  %v1743 = vrot.slane %v1729, %v1742
  %v1744 = vcombine.low %v1688, %v1704
  %v1745 = vcombine.high %v1688, %v1704
  %v1747 = vunpack.c.l.s4 1934713408
  %v1748 = vunpack.c.0.s8 %v1747
  %v1749 = vlaneseq
  %v1750 = vshrl.u32 %v1749, 7
  %v1751 = vsub.s32 %v1748, %v1750
  %v1752 = vrot.slane %v1744, %v1751
  %v1754 = vunpack.c.l.s4 1934713408
  %v1755 = vunpack.c.0.s8 %v1754
  %v1756 = vlaneseq
  %v1757 = vshrl.u32 %v1756, 7
  %v1758 = vsub.s32 %v1755, %v1757
  %v1759 = vrot.slane %v1745, %v1758
  %v1760 = vcombine.low %v1695, %v1711
  %v1761 = vcombine.high %v1695, %v1711
  %v1763 = vunpack.c.l.s4 1934713408
  %v1764 = vunpack.c.0.s8 %v1763
  %v1765 = vlaneseq
  %v1766 = vshrl.u32 %v1765, 7
  %v1767 = vsub.s32 %v1764, %v1766
  %v1768 = vrot.slane %v1760, %v1767
  %v1770 = vunpack.c.l.s4 1934713408
  %v1771 = vunpack.c.0.s8 %v1770
  %v1772 = vlaneseq
  %v1773 = vshrl.u32 %v1772, 7
  %v1774 = vsub.s32 %v1771, %v1773
  %v1775 = vrot.slane %v1761, %v1774
  %v1776 = vcombine.low %v1720, %v1736
  %v1777 = vcombine.high %v1720, %v1736
  %v1779 = vunpack.c.l.s4 1934713408
  %v1780 = vunpack.c.0.s8 %v1779
  %v1781 = vlaneseq
  %v1782 = vshrl.u32 %v1781, 7
  %v1783 = vsub.s32 %v1780, %v1782
  %v1784 = vrot.slane %v1776, %v1783
  %v1786 = vunpack.c.l.s4 1934713408
  %v1787 = vunpack.c.0.s8 %v1786
  %v1788 = vlaneseq
  %v1789 = vshrl.u32 %v1788, 7
  %v1790 = vsub.s32 %v1787, %v1789
  %v1791 = vrot.slane %v1777, %v1790
  %v1792 = vcombine.low %v1727, %v1743
  %v1793 = vcombine.high %v1727, %v1743
  %v1795 = vunpack.c.l.s4 1934713408
  %v1796 = vunpack.c.0.s8 %v1795
  %v1797 = vlaneseq
  %v1798 = vshrl.u32 %v1797, 7
  %v1799 = vsub.s32 %v1796, %v1798
  %v1800 = vrot.slane %v1792, %v1799
  %v1802 = vunpack.c.l.s4 1934713408
  %v1803 = vunpack.c.0.s8 %v1802
  %v1804 = vlaneseq
  %v1805 = vshrl.u32 %v1804, 7
  %v1806 = vsub.s32 %v1803, %v1805
  %v1807 = vrot.slane %v1793, %v1806
  %v1808 = vcombine.low %v1752, %v1784
  %v1809 = vcombine.high %v1752, %v1784
  %v1810 = vcombine.low %v1759, %v1791
  %v1811 = vcombine.high %v1759, %v1791
  %v1812 = vcombine.low %v1768, %v1800
  %v1813 = vcombine.high %v1768, %v1800
  %v1814 = vcombine.low %v1775, %v1807
  %v1815 = vcombine.high %v1775, %v1807
  %1817 = vrot.lane.b32.xlu0 %v1673, 16
  %v1818 = vpop.permute.xlu0 %1817
  %1821 = vrot.lane.b32.xlu0 %v1674, 32
  %v1822 = vpop.permute.xlu0 %1821
  %1825 = vrot.lane.b32.xlu0 %v1675, 48
  %v1826 = vpop.permute.xlu0 %1825
  %1829 = vrot.lane.b32.xlu0 %v1676, 64
  %v1830 = vpop.permute.xlu0 %1829
  %1833 = vrot.lane.b32.xlu0 %v1677, 80
  %v1834 = vpop.permute.xlu0 %1833
  %1837 = vrot.lane.b32.xlu0 %v1678, 96
  %v1838 = vpop.permute.xlu0 %1837
  %1841 = vrot.lane.b32.xlu0 %v1679, 112
  %v1842 = vpop.permute.xlu0 %1841
  %1845 = vrot.lane.b32.xlu0 %v1809, 16
  %v1846 = vpop.permute.xlu0 %1845
  %1849 = vrot.lane.b32.xlu0 %v1810, 32
  %v1850 = vpop.permute.xlu0 %1849
  %1853 = vrot.lane.b32.xlu0 %v1811, 48
  %v1854 = vpop.permute.xlu0 %1853
  %1857 = vrot.lane.b32.xlu0 %v1812, 64
  %v1858 = vpop.permute.xlu0 %1857
  %1861 = vrot.lane.b32.xlu0 %v1813, 80
  %v1862 = vpop.permute.xlu0 %1861
  %1865 = vrot.lane.b32.xlu0 %v1814, 96
  %v1866 = vpop.permute.xlu0 %1865
  %1869 = vrot.lane.b32.xlu0 %v1815, 112
  %v1870 = vpop.permute.xlu0 %1869
  %v1872 = vsel %vm942, %v1672, %v1818
  %v1873 = vsel %vm944, %v1872, %v1822
  %v1874 = vsel %vm946, %v1873, %v1826
  %v1875 = vsel %vm948, %v1874, %v1830
  %v1876 = vsel %vm950, %v1875, %v1834
  %v1877 = vsel %vm952, %v1876, %v1838
  %v1878 = vsel %vm954, %v1877, %v1842
  %v1879 = vsel %vm942, %v1808, %v1846
  %v1880 = vsel %vm944, %v1879, %v1850
  %v1881 = vsel %vm946, %v1880, %v1854
  %v1882 = vsel %vm948, %v1881, %v1858
  %v1883 = vsel %vm950, %v1882, %v1862
  %v1884 = vsel %vm952, %v1883, %v1866
  %v1885 = vsel %vm954, %v1884, %v1870
  %s1886 = scalar_lea.vmem %s3, 16
  %1887 = vst [vmem:[%s1886] sm:$0xff] %v1878
  %1888 = vst [vmem:[%s1886 + $0x8] sm:$0xff] %v1885
  // Predicated region
  $region14: #{conv2d_sym_forward.1} parent=0 // pred_check
    _
  $region15: #{conv2d_sym_forward.1} parent=0 // pred_check_branch
    %1890 = sbr.rel (0) target = $region17
  $region16: #{conv2d_sym_forward.1} parent=0 // pred_region
    _
  $region17: #{conv2d_sym_forward.1} parent=0 // pred_fallthru
    _
  // Predicated region
  $region18: #{conv2d_sym_forward.1} parent=0 // pred_check
    _
  $region19: #{conv2d_sym_forward.1} parent=0 // pred_check_branch
    %1892 = sbr.rel (0) target = $region21
  $region20: #{conv2d_sym_forward.1} parent=0 // pred_region
    _
  $region21: #{conv2d_sym_forward.1} parent=0 // pred_fallthru
    _

</llo_original>
